<compile_context>
chip_gen: v5e
topology: v5e:2x2
jax: 0.10.0
libtpu: 0.0.40
codegen_flags: <defaults>
</compile_context>

<pallas_src>
import jax
import jax.numpy as jnp
from jax import lax
from jax.experimental import pallas as pl
from jax.experimental.pallas import tpu as pltpu

EPS = 1e-5


def _vmem_limit_bytes():
    """Generation-aware VMEM budget (v7x: 64 MiB/TC, v5e/v6e: 128 MiB)."""
    try:
        cap = int(pltpu.get_tpu_info().vmem_capacity_bytes)
    except Exception:
        cap = 64 * 1024 * 1024
    return min(cap * 3 // 4, 96 * 1024 * 1024)


def _dw3x3_nhwc(x, w):
    """Depthwise 3x3 conv, stride 1, zero-pad 1, on an NHWC tile.

    x : (H, W, Cb) f32   (W on sublanes, Cb on lanes)
    w : (3, 3, Cb) f32   lane-aligned per-channel taps
    """
    H, W, _ = x.shape

    # W-axis boundary masks: built ONCE per invocation (one shared iota,
    # one compare each) and reused by the two masked sublane rolls.
    wi = lax.broadcasted_iota(jnp.int32, x.shape, 1)
    ok_m1 = wi >= 1          # position w reads w-1 -> invalid at w == 0
    ok_p1 = wi < (W - 1)     # position w reads w+1 -> invalid at w == W-1

    def shift_w(a, dx, ok):                      # y[:, w, :] = a[:, w+dx, :]
        rolled = pltpu.roll(a, shift=(-dx) % W, axis=1)
        return jnp.where(ok, rolled, 0.0)

    cols = (shift_w(x, -1, ok_m1), x, shift_w(x, 1, ok_p1))

    def shift_h(a, dy):                          # y[h] = a[h+dy], zero pad
        if dy == 0:
            return a
        zrow = jnp.zeros((1,) + a.shape[1:], a.dtype)
        if dy < 0:
            return jnp.concatenate([zrow, a[:-1]], axis=0)
        return jnp.concatenate([a[1:], zrow], axis=0)

    out = jnp.zeros_like(x)
    for dy in (-1, 0, 1):
        ky = dy + 1
        row = (cols[0] * w[ky:ky + 1, 0:1]       # (1,1,Cb) lane-broadcast taps
               + cols[1] * w[ky:ky + 1, 1:2]
               + cols[2] * w[ky:ky + 1, 2:3])
        out = out + shift_h(row, dy)
    return out


def _stats_kernel(x_ref, w_ref, mean_ref, m2_ref):
    """Per-(image, channel-block) BN partial stats of the (recomputed) conv."""
    x = x_ref[0].astype(jnp.float32)             # (H, W, Cb)
    w = w_ref[...].astype(jnp.float32)           # (3, 3, Cb)
    conv = _dw3x3_nhwc(x, w)
    hw = conv.shape[0] * conv.shape[1]
    m = jnp.sum(conv, axis=(0, 1), keepdims=True) * (1.0 / hw)   # (1, 1, Cb)
    d = conv - m
    m2 = jnp.sum(d * d, axis=(0, 1), keepdims=True)              # (1, 1, Cb)
    mean_ref[...] = m
    m2_ref[...] = m2


def _fused_kernel(x_ref, ws_ref, shift_ref, o_ref):
    """Fused depthwise conv (BN scale folded into taps) + shift + ReLU6."""
    x = x_ref[0].astype(jnp.float32)             # (H, W, Cb)
    ws = ws_ref[...]                             # (3, 3, Cb) f32, scale-folded
    y = _dw3x3_nhwc(x, ws) + shift_ref[...]      # (1,1,Cb) lane-broadcast shift
    y = jnp.minimum(jnp.maximum(y, 0.0), 6.0)    # ReLU6
    o_ref[0] = y.astype(o_ref.dtype)


def depthwise_conv_block_nhwc(x_nhwc, w_hwc, gamma, beta):
    """x_nhwc: (N, H, W, C); w_hwc: (3, 3, C) depthwise taps; gamma/beta: (C,)."""
    N, H, W, C = x_nhwc.shape
    CB = C if C <= 128 else 128                  # channel block bounds VMEM for large C
    gc = pl.cdiv(C, CB)
    w_hwc = w_hwc.astype(jnp.float32)

    x_spec = pl.BlockSpec((1, H, W, CB), lambda c, n: (n, 0, 0, c))
    w_spec = pl.BlockSpec((3, 3, CB), lambda c, n: (0, 0, c))      # invariant over n
    stat_spec = pl.BlockSpec((1, 1, CB), lambda c, n: (n, 0, c))
    vec_spec = pl.BlockSpec((1, 1, CB), lambda c, n: (0, 0, c))    # invariant over n
    cparams = pltpu.CompilerParams(
        dimension_semantics=("parallel", "parallel"),
        vmem_limit_bytes=_vmem_limit_bytes(),
    )

    # Pass 1: reads x once, writes tiny lane-dense (N, 1, C) partial stats.
    pmean, pm2 = pl.pallas_call(
        _stats_kernel,
        out_shape=(jax.ShapeDtypeStruct((N, 1, C), jnp.float32),
                   jax.ShapeDtypeStruct((N, 1, C), jnp.float32)),
        grid=(gc, N),
        in_specs=[x_spec, w_spec],
        out_specs=(stat_spec, stat_spec),
        compiler_params=cparams,
    )(x_nhwc, w_hwc)

    # Tiny per-channel glue: stable Chan parallel-variance combine, then fold
    # gamma and the BN scale into the conv taps so pass 2 is conv + add + clamp.
    pm = pmean[:, 0, :]                          # (N, C) per-image means
    pM2 = pm2[:, 0, :]                           # (N, C) per-image centered M2
    cnt = float(H * W)
    mean = jnp.mean(pm, axis=0)                                           # (C,)
    M2 = jnp.sum(pM2, axis=0) + cnt * jnp.sum((pm - mean[None, :]) ** 2, axis=0)
    var = M2 / float(N * H * W)                                           # biased (train-mode BN)
    scale = gamma.astype(jnp.float32) * lax.rsqrt(var + EPS)
    shift = beta.astype(jnp.float32) - mean * scale
    w_scaled = w_hwc * scale[None, None, :]      # fold BN scale into the taps

    # Pass 2: reads x once, writes the output once (in the input dtype).
    out = pl.pallas_call(
        _fused_kernel,
        out_shape=jax.ShapeDtypeStruct((N, H, W, C), x_nhwc.dtype),
        grid=(gc, N),
        in_specs=[x_spec, w_spec, vec_spec],
        out_specs=x_spec,
        compiler_params=cparams,
    )(x_nhwc, w_scaled, shift.reshape(1, 1, C))

    return out


def depthwise_conv_block(x_nchw, w_dw, gamma, beta):
    """PyTorch-layout entry point.  x_nchw: (N, C, H, W); w_dw: (C, 3, 3).

    The NCHW<->NHWC transposes here belong at the model boundary in a real
    NHWC pipeline; the Pallas kernels themselves are channels-on-lanes.
    """
    x_nhwc = jnp.transpose(x_nchw, (0, 2, 3, 1))
    w_hwc = jnp.transpose(w_dw, (1, 2, 0))
    out_nhwc = depthwise_conv_block_nhwc(x_nhwc, w_hwc, gamma, beta)
    return jnp.transpose(out_nhwc, (0, 3, 1, 2))


def _reference(x_nchw, w_dw, gamma, beta):
    """Pure-JAX reference mirroring the PyTorch forward (train-mode BN)."""
    C = x_nchw.shape[1]
    w_oihw = w_dw[:, None, :, :]                                  # (C,1,3,3)
    conv = lax.conv_general_dilated(
        x_nchw, w_oihw, window_strides=(1, 1), padding=((1, 1), (1, 1)),
        dimension_numbers=("NCHW", "OIHW", "NCHW"), feature_group_count=C)
    mean = conv.mean(axis=(0, 2, 3))
    var = conv.var(axis=(0, 2, 3))                                # biased
    y = (conv - mean[None, :, None, None]) * lax.rsqrt(var + EPS)[None, :, None, None]
    y = y * gamma[None, :, None, None] + beta[None, :, None, None]
    return jnp.clip(y, 0.0, 6.0)


if __name__ == "__main__":
    key = jax.random.PRNGKey(0)
    k_x, k_w, k_g, k_b = jax.random.split(key, 4)

    N, C, H, W = 2, 4, 16, 16
    x = jax.random.normal(k_x, (N, C, H, W), jnp.float32)
    w_dw = jax.random.normal(k_w, (C, 3, 3), jnp.float32) * 0.3   # depthwise filters
    gamma = 1.0 + 0.1 * jax.random.normal(k_g, (C,), jnp.float32)
    beta = 0.1 * jax.random.normal(k_b, (C,), jnp.float32)

    fn = jax.jit(depthwise_conv_block)
    out = jax.block_until_ready(fn(x, w_dw, gamma, beta))

    ref = _reference(x, w_dw, gamma, beta)
    assert out.shape == (N, C, H, W)
    assert jnp.allclose(out, ref, rtol=1e-4, atol=1e-4), "mismatch vs reference"

    print("KERNEL_OK")
</pallas_src>

<mosaic_0001>
module attributes {stable_mosaic.version = 11 : i64} {
  func.func @_stats_kernel(%arg0: i32, %arg1: i32, %arg2: memref<1x16x16x4xf32, #tpu.memory_space<vmem>>, %arg3: memref<3x3x4xf32, #tpu.memory_space<vmem>>, %arg4: memref<1x1x4xf32, #tpu.memory_space<vmem>>, %arg5: memref<1x1x4xf32, #tpu.memory_space<vmem>>) attributes {dimension_semantics = [#tpu.dimension_semantics<parallel>, #tpu.dimension_semantics<parallel>], iteration_bounds = array<i64: 1, 2>, scalar_prefetch = 0 : i64, scratch_operands = 0 : i64, tpu.core_type = #tpu.core_type<tc>, window_params = [{transform_indices = @transform_0, window_bounds = array<i64: 1, 16, 16, 4>}, {transform_indices = @transform_1, window_bounds = array<i64: 3, 3, 4>}, {transform_indices = @transform_2, window_bounds = array<i64: 1, 1, 4>}, {transform_indices = @transform_3, window_bounds = array<i64: 1, 1, 4>}]} {
    %c0 = arith.constant 0 : index
    %c0_0 = arith.constant 0 : index
    %c0_1 = arith.constant 0 : index
    %c0_2 = arith.constant 0 : index
    %0 = vector.load %arg2[%c0, %c0_0, %c0_1, %c0_2] : memref<1x16x16x4xf32, #tpu.memory_space<vmem>>, vector<1x16x16x4xf32>
    %1 = vector.shape_cast %0 : vector<1x16x16x4xf32> to vector<16x16x4xf32>
    %c0_3 = arith.constant 0 : index
    %c0_4 = arith.constant 0 : index
    %c0_5 = arith.constant 0 : index
    %2 = vector.load %arg3[%c0_3, %c0_4, %c0_5] : memref<3x3x4xf32, #tpu.memory_space<vmem>>, vector<3x3x4xf32>
    %3 = tpu.iota {dimensions = array<i32: 1>} : vector<16x16x4xi32>
    %c1_i32 = arith.constant 1 : i32
    %4 = vector.broadcast %c1_i32 : i32 to vector<16x16x4xi32>
    %5 = arith.cmpi sge, %3, %4 : vector<16x16x4xi32>
    %c15_i32 = arith.constant 15 : i32
    %6 = vector.broadcast %c15_i32 : i32 to vector<16x16x4xi32>
    %7 = arith.cmpi slt, %3, %6 : vector<16x16x4xi32>
    %c1_i32_6 = arith.constant 1 : i32
    %8 = tpu.dynamic_rotate %1 by %c1_i32_6 dim 1 : vector<16x16x4xf32>, i32 -> vector<16x16x4xf32>
    %cst = arith.constant 0.000000e+00 : f32
    %9 = vector.broadcast %cst : f32 to vector<16x16x4xf32>
    %10 = arith.select %5, %8, %9 : vector<16x16x4xi1>, vector<16x16x4xf32>
    %c15_i32_7 = arith.constant 15 : i32
    %11 = tpu.dynamic_rotate %1 by %c15_i32_7 dim 1 : vector<16x16x4xf32>, i32 -> vector<16x16x4xf32>
    %cst_8 = arith.constant 0.000000e+00 : f32
    %12 = vector.broadcast %cst_8 : f32 to vector<16x16x4xf32>
    %13 = arith.select %7, %11, %12 : vector<16x16x4xi1>, vector<16x16x4xf32>
    %cst_9 = arith.constant 0.000000e+00 : f32
    %14 = vector.broadcast %cst_9 : f32 to vector<16x16x4xf32>
    %15 = vector.extract_strided_slice %2 {offsets = [0, 0, 0], sizes = [1, 1, 4], strides = [1, 1, 1]} : vector<3x3x4xf32> to vector<1x1x4xf32>
    %16 = vector.broadcast %15 : vector<1x1x4xf32> to vector<16x16x4xf32>
    %17 = arith.mulf %10, %16 : vector<16x16x4xf32>
    %18 = vector.extract_strided_slice %2 {offsets = [0, 1, 0], sizes = [1, 1, 4], strides = [1, 1, 1]} : vector<3x3x4xf32> to vector<1x1x4xf32>
    %19 = vector.broadcast %18 : vector<1x1x4xf32> to vector<16x16x4xf32>
    %20 = arith.mulf %1, %19 : vector<16x16x4xf32>
    %21 = arith.addf %17, %20 : vector<16x16x4xf32>
    %22 = vector.extract_strided_slice %2 {offsets = [0, 2, 0], sizes = [1, 1, 4], strides = [1, 1, 1]} : vector<3x3x4xf32> to vector<1x1x4xf32>
    %23 = vector.broadcast %22 : vector<1x1x4xf32> to vector<16x16x4xf32>
    %24 = arith.mulf %13, %23 : vector<16x16x4xf32>
    %25 = arith.addf %21, %24 : vector<16x16x4xf32>
    %cst_10 = arith.constant 0.000000e+00 : f32
    %26 = vector.broadcast %cst_10 : f32 to vector<1x16x4xf32>
    %27 = vector.extract_strided_slice %25 {offsets = [0, 0, 0], sizes = [15, 16, 4], strides = [1, 1, 1]} : vector<16x16x4xf32> to vector<15x16x4xf32>
    %28 = tpu.concatenate %26, %27 in 0 : vector<1x16x4xf32>, vector<15x16x4xf32> -> vector<16x16x4xf32>
    %29 = arith.addf %14, %28 : vector<16x16x4xf32>
    %30 = vector.extract_strided_slice %2 {offsets = [1, 0, 0], sizes = [1, 1, 4], strides = [1, 1, 1]} : vector<3x3x4xf32> to vector<1x1x4xf32>
    %31 = vector.broadcast %30 : vector<1x1x4xf32> to vector<16x16x4xf32>
    %32 = arith.mulf %10, %31 : vector<16x16x4xf32>
    %33 = vector.extract_strided_slice %2 {offsets = [1, 1, 0], sizes = [1, 1, 4], strides = [1, 1, 1]} : vector<3x3x4xf32> to vector<1x1x4xf32>
    %34 = vector.broadcast %33 : vector<1x1x4xf32> to vector<16x16x4xf32>
    %35 = arith.mulf %1, %34 : vector<16x16x4xf32>
    %36 = arith.addf %32, %35 : vector<16x16x4xf32>
    %37 = vector.extract_strided_slice %2 {offsets = [1, 2, 0], sizes = [1, 1, 4], strides = [1, 1, 1]} : vector<3x3x4xf32> to vector<1x1x4xf32>
    %38 = vector.broadcast %37 : vector<1x1x4xf32> to vector<16x16x4xf32>
    %39 = arith.mulf %13, %38 : vector<16x16x4xf32>
    %40 = arith.addf %36, %39 : vector<16x16x4xf32>
    %41 = arith.addf %29, %40 : vector<16x16x4xf32>
    %42 = vector.extract_strided_slice %2 {offsets = [2, 0, 0], sizes = [1, 1, 4], strides = [1, 1, 1]} : vector<3x3x4xf32> to vector<1x1x4xf32>
    %43 = vector.broadcast %42 : vector<1x1x4xf32> to vector<16x16x4xf32>
    %44 = arith.mulf %10, %43 : vector<16x16x4xf32>
    %45 = vector.extract_strided_slice %2 {offsets = [2, 1, 0], sizes = [1, 1, 4], strides = [1, 1, 1]} : vector<3x3x4xf32> to vector<1x1x4xf32>
    %46 = vector.broadcast %45 : vector<1x1x4xf32> to vector<16x16x4xf32>
    %47 = arith.mulf %1, %46 : vector<16x16x4xf32>
    %48 = arith.addf %44, %47 : vector<16x16x4xf32>
    %49 = vector.extract_strided_slice %2 {offsets = [2, 2, 0], sizes = [1, 1, 4], strides = [1, 1, 1]} : vector<3x3x4xf32> to vector<1x1x4xf32>
    %50 = vector.broadcast %49 : vector<1x1x4xf32> to vector<16x16x4xf32>
    %51 = arith.mulf %13, %50 : vector<16x16x4xf32>
    %52 = arith.addf %48, %51 : vector<16x16x4xf32>
    %cst_11 = arith.constant 0.000000e+00 : f32
    %53 = vector.broadcast %cst_11 : f32 to vector<1x16x4xf32>
    %54 = vector.extract_strided_slice %52 {offsets = [1, 0, 0], sizes = [15, 16, 4], strides = [1, 1, 1]} : vector<16x16x4xf32> to vector<15x16x4xf32>
    %55 = tpu.concatenate %54, %53 in 0 : vector<15x16x4xf32>, vector<1x16x4xf32> -> vector<16x16x4xf32>
    %56 = arith.addf %41, %55 : vector<16x16x4xf32>
    %cst_12 = arith.constant dense<0.000000e+00> : vector<4xf32>
    %57 = vector.multi_reduction <add>, %56, %cst_12 [0, 1] : vector<16x16x4xf32> to vector<4xf32>
    %58 = vector.shape_cast %57 : vector<4xf32> to vector<1x1x4xf32>
    %cst_13 = arith.constant 3.906250e-03 : f32
    %59 = vector.broadcast %cst_13 : f32 to vector<1x1x4xf32>
    %60 = arith.mulf %58, %59 : vector<1x1x4xf32>
    %61 = vector.broadcast %60 : vector<1x1x4xf32> to vector<16x16x4xf32>
    %62 = arith.subf %56, %61 : vector<16x16x4xf32>
    %63 = arith.mulf %62, %62 : vector<16x16x4xf32>
    %cst_14 = arith.constant dense<0.000000e+00> : vector<4xf32>
    %64 = vector.multi_reduction <add>, %63, %cst_14 [0, 1] : vector<16x16x4xf32> to vector<4xf32>
    %65 = vector.shape_cast %64 : vector<4xf32> to vector<1x1x4xf32>
    %c0_15 = arith.constant 0 : index
    %c0_16 = arith.constant 0 : index
    %c0_17 = arith.constant 0 : index
    %66 = vector.load %arg4[%c0_15, %c0_16, %c0_17] : memref<1x1x4xf32, #tpu.memory_space<vmem>>, vector<1x1x4xf32>
    tpu.vector_store %arg4[%c0_15, %c0_16, %c0_17], %60 {strides = array<i32>} : memref<1x1x4xf32, #tpu.memory_space<vmem>>, vector<1x1x4xf32>,
    %c0_18 = arith.constant 0 : index
    %c0_19 = arith.constant 0 : index
    %c0_20 = arith.constant 0 : index
    %67 = vector.load %arg5[%c0_18, %c0_19, %c0_20] : memref<1x1x4xf32, #tpu.memory_space<vmem>>, vector<1x1x4xf32>
    tpu.vector_store %arg5[%c0_18, %c0_19, %c0_20], %65 {strides = array<i32>} : memref<1x1x4xf32, #tpu.memory_space<vmem>>, vector<1x1x4xf32>,
    return
  }
  func.func @transform_0(%arg0: i32, %arg1: i32) -> (i32, i32, i32, i32) {
    %c0_i32 = arith.constant 0 : i32
    %c0_i32_0 = arith.constant 0 : i32
    %c0_i32_1 = arith.constant 0 : i32
    return %arg1, %c0_i32, %c0_i32_0, %arg0 : i32, i32, i32, i32
  }
  func.func @transform_1(%arg0: i32, %arg1: i32) -> (i32, i32, i32) {
    %c0_i32 = arith.constant 0 : i32
    %c0_i32_0 = arith.constant 0 : i32
    %c0_i32_1 = arith.constant 0 : i32
    return %c0_i32, %c0_i32_0, %arg0 : i32, i32, i32
  }
  func.func @transform_2(%arg0: i32, %arg1: i32) -> (i32, i32, i32) {
    %c0_i32 = arith.constant 0 : i32
    %c0_i32_0 = arith.constant 0 : i32
    return %arg1, %c0_i32, %arg0 : i32, i32, i32
  }
  func.func @transform_3(%arg0: i32, %arg1: i32) -> (i32, i32, i32) {
    %c0_i32 = arith.constant 0 : i32
    %c0_i32_0 = arith.constant 0 : i32
    return %arg1, %c0_i32, %arg0 : i32, i32, i32
  }
}

module attributes {stable_mosaic.version = 11 : i64} {
  func.func @_fused_kernel(%arg0: i32, %arg1: i32, %arg2: memref<1x16x16x4xf32, #tpu.memory_space<vmem>>, %arg3: memref<3x3x4xf32, #tpu.memory_space<vmem>>, %arg4: memref<1x1x4xf32, #tpu.memory_space<vmem>>, %arg5: memref<1x16x16x4xf32, #tpu.memory_space<vmem>>) attributes {dimension_semantics = [#tpu.dimension_semantics<parallel>, #tpu.dimension_semantics<parallel>], iteration_bounds = array<i64: 1, 2>, scalar_prefetch = 0 : i64, scratch_operands = 0 : i64, tpu.core_type = #tpu.core_type<tc>, window_params = [{transform_indices = @transform_0, window_bounds = array<i64: 1, 16, 16, 4>}, {transform_indices = @transform_1, window_bounds = array<i64: 3, 3, 4>}, {transform_indices = @transform_2, window_bounds = array<i64: 1, 1, 4>}, {transform_indices = @transform_3, window_bounds = array<i64: 1, 16, 16, 4>}]} {
    %c0 = arith.constant 0 : index
    %c0_0 = arith.constant 0 : index
    %c0_1 = arith.constant 0 : index
    %c0_2 = arith.constant 0 : index
    %0 = vector.load %arg2[%c0, %c0_0, %c0_1, %c0_2] : memref<1x16x16x4xf32, #tpu.memory_space<vmem>>, vector<1x16x16x4xf32>
    %1 = vector.shape_cast %0 : vector<1x16x16x4xf32> to vector<16x16x4xf32>
    %c0_3 = arith.constant 0 : index
    %c0_4 = arith.constant 0 : index
    %c0_5 = arith.constant 0 : index
    %2 = vector.load %arg3[%c0_3, %c0_4, %c0_5] : memref<3x3x4xf32, #tpu.memory_space<vmem>>, vector<3x3x4xf32>
    %3 = tpu.iota {dimensions = array<i32: 1>} : vector<16x16x4xi32>
    %c1_i32 = arith.constant 1 : i32
    %4 = vector.broadcast %c1_i32 : i32 to vector<16x16x4xi32>
    %5 = arith.cmpi sge, %3, %4 : vector<16x16x4xi32>
    %c15_i32 = arith.constant 15 : i32
    %6 = vector.broadcast %c15_i32 : i32 to vector<16x16x4xi32>
    %7 = arith.cmpi slt, %3, %6 : vector<16x16x4xi32>
    %c1_i32_6 = arith.constant 1 : i32
    %8 = tpu.dynamic_rotate %1 by %c1_i32_6 dim 1 : vector<16x16x4xf32>, i32 -> vector<16x16x4xf32>
    %cst = arith.constant 0.000000e+00 : f32
    %9 = vector.broadcast %cst : f32 to vector<16x16x4xf32>
    %10 = arith.select %5, %8, %9 : vector<16x16x4xi1>, vector<16x16x4xf32>
    %c15_i32_7 = arith.constant 15 : i32
    %11 = tpu.dynamic_rotate %1 by %c15_i32_7 dim 1 : vector<16x16x4xf32>, i32 -> vector<16x16x4xf32>
    %cst_8 = arith.constant 0.000000e+00 : f32
    %12 = vector.broadcast %cst_8 : f32 to vector<16x16x4xf32>
    %13 = arith.select %7, %11, %12 : vector<16x16x4xi1>, vector<16x16x4xf32>
    %cst_9 = arith.constant 0.000000e+00 : f32
    %14 = vector.broadcast %cst_9 : f32 to vector<16x16x4xf32>
    %15 = vector.extract_strided_slice %2 {offsets = [0, 0, 0], sizes = [1, 1, 4], strides = [1, 1, 1]} : vector<3x3x4xf32> to vector<1x1x4xf32>
    %16 = vector.broadcast %15 : vector<1x1x4xf32> to vector<16x16x4xf32>
    %17 = arith.mulf %10, %16 : vector<16x16x4xf32>
    %18 = vector.extract_strided_slice %2 {offsets = [0, 1, 0], sizes = [1, 1, 4], strides = [1, 1, 1]} : vector<3x3x4xf32> to vector<1x1x4xf32>
    %19 = vector.broadcast %18 : vector<1x1x4xf32> to vector<16x16x4xf32>
    %20 = arith.mulf %1, %19 : vector<16x16x4xf32>
    %21 = arith.addf %17, %20 : vector<16x16x4xf32>
    %22 = vector.extract_strided_slice %2 {offsets = [0, 2, 0], sizes = [1, 1, 4], strides = [1, 1, 1]} : vector<3x3x4xf32> to vector<1x1x4xf32>
    %23 = vector.broadcast %22 : vector<1x1x4xf32> to vector<16x16x4xf32>
    %24 = arith.mulf %13, %23 : vector<16x16x4xf32>
    %25 = arith.addf %21, %24 : vector<16x16x4xf32>
    %cst_10 = arith.constant 0.000000e+00 : f32
    %26 = vector.broadcast %cst_10 : f32 to vector<1x16x4xf32>
    %27 = vector.extract_strided_slice %25 {offsets = [0, 0, 0], sizes = [15, 16, 4], strides = [1, 1, 1]} : vector<16x16x4xf32> to vector<15x16x4xf32>
    %28 = tpu.concatenate %26, %27 in 0 : vector<1x16x4xf32>, vector<15x16x4xf32> -> vector<16x16x4xf32>
    %29 = arith.addf %14, %28 : vector<16x16x4xf32>
    %30 = vector.extract_strided_slice %2 {offsets = [1, 0, 0], sizes = [1, 1, 4], strides = [1, 1, 1]} : vector<3x3x4xf32> to vector<1x1x4xf32>
    %31 = vector.broadcast %30 : vector<1x1x4xf32> to vector<16x16x4xf32>
    %32 = arith.mulf %10, %31 : vector<16x16x4xf32>
    %33 = vector.extract_strided_slice %2 {offsets = [1, 1, 0], sizes = [1, 1, 4], strides = [1, 1, 1]} : vector<3x3x4xf32> to vector<1x1x4xf32>
    %34 = vector.broadcast %33 : vector<1x1x4xf32> to vector<16x16x4xf32>
    %35 = arith.mulf %1, %34 : vector<16x16x4xf32>
    %36 = arith.addf %32, %35 : vector<16x16x4xf32>
    %37 = vector.extract_strided_slice %2 {offsets = [1, 2, 0], sizes = [1, 1, 4], strides = [1, 1, 1]} : vector<3x3x4xf32> to vector<1x1x4xf32>
    %38 = vector.broadcast %37 : vector<1x1x4xf32> to vector<16x16x4xf32>
    %39 = arith.mulf %13, %38 : vector<16x16x4xf32>
    %40 = arith.addf %36, %39 : vector<16x16x4xf32>
    %41 = arith.addf %29, %40 : vector<16x16x4xf32>
    %42 = vector.extract_strided_slice %2 {offsets = [2, 0, 0], sizes = [1, 1, 4], strides = [1, 1, 1]} : vector<3x3x4xf32> to vector<1x1x4xf32>
    %43 = vector.broadcast %42 : vector<1x1x4xf32> to vector<16x16x4xf32>
    %44 = arith.mulf %10, %43 : vector<16x16x4xf32>
    %45 = vector.extract_strided_slice %2 {offsets = [2, 1, 0], sizes = [1, 1, 4], strides = [1, 1, 1]} : vector<3x3x4xf32> to vector<1x1x4xf32>
    %46 = vector.broadcast %45 : vector<1x1x4xf32> to vector<16x16x4xf32>
    %47 = arith.mulf %1, %46 : vector<16x16x4xf32>
    %48 = arith.addf %44, %47 : vector<16x16x4xf32>
    %49 = vector.extract_strided_slice %2 {offsets = [2, 2, 0], sizes = [1, 1, 4], strides = [1, 1, 1]} : vector<3x3x4xf32> to vector<1x1x4xf32>
    %50 = vector.broadcast %49 : vector<1x1x4xf32> to vector<16x16x4xf32>
    %51 = arith.mulf %13, %50 : vector<16x16x4xf32>
    %52 = arith.addf %48, %51 : vector<16x16x4xf32>
    %cst_11 = arith.constant 0.000000e+00 : f32
    %53 = vector.broadcast %cst_11 : f32 to vector<1x16x4xf32>
    %54 = vector.extract_strided_slice %52 {offsets = [1, 0, 0], sizes = [15, 16, 4], strides = [1, 1, 1]} : vector<16x16x4xf32> to vector<15x16x4xf32>
    %55 = tpu.concatenate %54, %53 in 0 : vector<15x16x4xf32>, vector<1x16x4xf32> -> vector<16x16x4xf32>
    %56 = arith.addf %41, %55 : vector<16x16x4xf32>
    %c0_12 = arith.constant 0 : index
    %c0_13 = arith.constant 0 : index
    %c0_14 = arith.constant 0 : index
    %57 = vector.load %arg4[%c0_12, %c0_13, %c0_14] : memref<1x1x4xf32, #tpu.memory_space<vmem>>, vector<1x1x4xf32>
    %58 = vector.broadcast %57 : vector<1x1x4xf32> to vector<16x16x4xf32>
    %59 = arith.addf %56, %58 : vector<16x16x4xf32>
    %cst_15 = arith.constant 0.000000e+00 : f32
    %60 = vector.broadcast %cst_15 : f32 to vector<16x16x4xf32>
    %61 = arith.maximumf %59, %60 : vector<16x16x4xf32>
    %cst_16 = arith.constant 6.000000e+00 : f32
    %62 = vector.broadcast %cst_16 : f32 to vector<16x16x4xf32>
    %63 = arith.minimumf %61, %62 : vector<16x16x4xf32>
    %c0_17 = arith.constant 0 : index
    %c0_18 = arith.constant 0 : index
    %c0_19 = arith.constant 0 : index
    %c0_20 = arith.constant 0 : index
    %64 = vector.load %arg5[%c0_17, %c0_18, %c0_19, %c0_20] : memref<1x16x16x4xf32, #tpu.memory_space<vmem>>, vector<1x16x16x4xf32>
    %65 = vector.shape_cast %64 : vector<1x16x16x4xf32> to vector<16x16x4xf32>
    %66 = vector.shape_cast %63 : vector<16x16x4xf32> to vector<1x16x16x4xf32>
    tpu.vector_store %arg5[%c0_17, %c0_18, %c0_19, %c0_20], %66 {strides = array<i32>} : memref<1x16x16x4xf32, #tpu.memory_space<vmem>>, vector<1x16x16x4xf32>,
    return
  }
  func.func @transform_0(%arg0: i32, %arg1: i32) -> (i32, i32, i32, i32) {
    %c0_i32 = arith.constant 0 : i32
    %c0_i32_0 = arith.constant 0 : i32
    %c0_i32_1 = arith.constant 0 : i32
    return %arg1, %c0_i32, %c0_i32_0, %arg0 : i32, i32, i32, i32
  }
  func.func @transform_1(%arg0: i32, %arg1: i32) -> (i32, i32, i32) {
    %c0_i32 = arith.constant 0 : i32
    %c0_i32_0 = arith.constant 0 : i32
    %c0_i32_1 = arith.constant 0 : i32
    return %c0_i32, %c0_i32_0, %arg0 : i32, i32, i32
  }
  func.func @transform_2(%arg0: i32, %arg1: i32) -> (i32, i32, i32) {
    %c0_i32 = arith.constant 0 : i32
    %c0_i32_0 = arith.constant 0 : i32
    %c0_i32_1 = arith.constant 0 : i32
    return %c0_i32, %c0_i32_0, %arg0 : i32, i32, i32
  }
  func.func @transform_3(%arg0: i32, %arg1: i32) -> (i32, i32, i32, i32) {
    %c0_i32 = arith.constant 0 : i32
    %c0_i32_0 = arith.constant 0 : i32
    %c0_i32_1 = arith.constant 0 : i32
    return %arg1, %c0_i32, %c0_i32_0, %arg0 : i32, i32, i32, i32
  }
}

</mosaic_0001>

<llo_original>
// kernel: depthwise_conv_block.2
$region0: #{depthwise_conv_block.2}
  #allocation0 [shape = 'u32[]', space=smem, size = 0x4, offset = 0x4, fixed_abs, tag = 'smem constant byte address 0x4 - core index']
  #allocation1 [shape = 'u32[72,128]{1,0:T(1,128)}', space=vmem, size = 0x9000, scoped, tag = 'internal scratch']
  %s0 = inlined_call_operand.vmem [shape: f32[2,16,16,4], index: 0, kind: input, shape index: {}]
  %s1 = inlined_call_operand.vmem [shape: f32[3,3,4], index: 1, kind: input, shape index: {}]
  %s2 = inlined_call_operand.vmem [shape: f32[2,1,4], index: 2, kind: output, shape index: {0}]
  %s3 = inlined_call_operand.vmem [shape: f32[2,1,4], index: 3, kind: output, shape index: {1}]
  %4 = xla_tuple %s2, %s3
  %s5 = sld [smem:[#allocation0]]
  $region49: #{depthwise_conv_block.2} parent=0
    _
  %s7 = ssub.s32 1, %s5
  %s8 = scalar_select 0, %s7, %s5
  loop: start=0, step=1, limit=4
  $region2: #{depthwise_conv_block.2} parent=0 // loop_pre_header
    _
  $region3: #{depthwise_conv_block.2} parent=0 // loop_header
    %s10 = sphi 0, %s14
    %p11 = scmp.ge.s32.totalorder %s10, 4
    %s17 = sphi 0, %s29
    %s18 = sphi 0, %s25
    %s19 = sphi 0, %s17
    %s20 = sphi 0, %s18
    %s21 = sphi 0, %s19
    %s22 = sphi 0, %s20
    %s34 = sphi 0, %s36
    %s37 = sphi 0, %s34
    %s38 = sphi 0, %s37
    %s54 = sphi 0, %s38
    %s60 = sphi 0, %s62
    %s63 = sphi 0, %s60
    %s64 = sphi 0, %s63
    %s80 = sphi 0, %s64
    %s88 = sphi 0, %s90
    %s91 = sphi 0, %s88
    %s92 = sphi 0, %s91
    %s108 = sphi 0, %s92
    %s116 = sphi 0, %s118
    %s119 = sphi 0, %s116
    %s120 = sphi 0, %s119
    %s136 = sphi 0, %s120
  $region4: #{depthwise_conv_block.2} parent=0 // loop_header_branch
    %13 = sbr.rel (%p11) target = $region8
  $region5: #{depthwise_conv_block.2} parent=0 // loop_body
    %s15 = ssub.s32 %s10, 1
    %s16 = ssub.s32 %s10, 2
    %s23 = sadd.s32 1, %s18
    %p24 = scmp.ge.s32.totalorder %s23, 2
    %s25 = scalar_select %p24, 0, %s23
    %s26 = sadd.s32 1, %s17
    %s27 = scalar_select %p24, %s26, %s17
    %p28 = scmp.ge.s32.totalorder %s27, 1
    %s29 = scalar_select %p28, 0, %s27
    %s30 = ssub.s32 %s18, %s25
    %s31 = ssub.s32 %s17, %s29
    %s32 = sor.u32 %s30, %s31
    %p33 = scmp.eq.s32.totalorder %s32, 0
    %s35 = sadd.s32 %s34, 1
    %s36 = scalar_select %p33, %s34, %s35
    %p39 = pneg %p33
    %p40 = scmp.eq.s32.totalorder %s10, 1
    %p41 = por %p39, %p40
    %p42 = scmp.ne.s32.totalorder %s34, %s37
    %p43 = scmp.eq.s32.totalorder %s10, 0
    %p44 = por %p42, %p43
    %p45 = scmp.ne.s32.totalorder %s34, %s37
    %p46 = scmp.eq.s32.totalorder %s15, 1
    %p47 = por %p45, %p46
    %p48 = scmp.ne.s32.totalorder %s37, %s38
    %p49 = scmp.eq.s32.totalorder %s15, 0
    %p50 = por %p48, %p49
    %p51 = scmp.ne.s32.totalorder %s37, %s38
    %p52 = scmp.eq.s32.totalorder %s16, 1
    %p53 = por %p51, %p52
    %p55 = scmp.ne.s32.totalorder %s38, %s54
    %p56 = scmp.eq.s32.totalorder %s16, 0
    %p57 = por %p55, %p56
    %s58 = ssub.s32 %s17, %s29
    %p59 = scmp.eq.s32.totalorder %s58, 0
    %s61 = sadd.s32 %s60, 1
    %s62 = scalar_select %p59, %s60, %s61
    %p65 = pneg %p59
    %p66 = scmp.eq.s32.totalorder %s10, 1
    %p67 = por %p65, %p66
    %p68 = scmp.ne.s32.totalorder %s60, %s63
    %p69 = scmp.eq.s32.totalorder %s10, 0
    %p70 = por %p68, %p69
    %p71 = scmp.ne.s32.totalorder %s60, %s63
    %p72 = scmp.eq.s32.totalorder %s15, 1
    %p73 = por %p71, %p72
    %p74 = scmp.ne.s32.totalorder %s63, %s64
    %p75 = scmp.eq.s32.totalorder %s15, 0
    %p76 = por %p74, %p75
    %p77 = scmp.ne.s32.totalorder %s63, %s64
    %p78 = scmp.eq.s32.totalorder %s16, 1
    %p79 = por %p77, %p78
    %p81 = scmp.ne.s32.totalorder %s64, %s80
    %p82 = scmp.eq.s32.totalorder %s16, 0
    %p83 = por %p81, %p82
    %s84 = ssub.s32 %s18, %s25
    %s85 = ssub.s32 %s17, %s29
    %s86 = sor.u32 %s84, %s85
    %p87 = scmp.eq.s32.totalorder %s86, 0
    %s89 = sadd.s32 %s88, 1
    %s90 = scalar_select %p87, %s88, %s89
    %p93 = pneg %p87
    %p94 = scmp.eq.s32.totalorder %s10, 1
    %p95 = por %p93, %p94
    %p96 = scmp.ne.s32.totalorder %s88, %s91
    %p97 = scmp.eq.s32.totalorder %s10, 0
    %p98 = por %p96, %p97
    %p99 = scmp.ne.s32.totalorder %s88, %s91
    %p100 = scmp.eq.s32.totalorder %s15, 1
    %p101 = por %p99, %p100
    %p102 = scmp.ne.s32.totalorder %s91, %s92
    %p103 = scmp.eq.s32.totalorder %s15, 0
    %p104 = por %p102, %p103
    %p105 = scmp.ne.s32.totalorder %s91, %s92
    %p106 = scmp.eq.s32.totalorder %s16, 1
    %p107 = por %p105, %p106
    %p109 = scmp.ne.s32.totalorder %s92, %s108
    %p110 = scmp.eq.s32.totalorder %s16, 0
    %p111 = por %p109, %p110
    %s112 = ssub.s32 %s18, %s25
    %s113 = ssub.s32 %s17, %s29
    %s114 = sor.u32 %s112, %s113
    %p115 = scmp.eq.s32.totalorder %s114, 0
    %s117 = sadd.s32 %s116, 1
    %s118 = scalar_select %p115, %s116, %s117
    %p121 = pneg %p115
    %p122 = scmp.eq.s32.totalorder %s10, 1
    %p123 = por %p121, %p122
    %p124 = scmp.ne.s32.totalorder %s116, %s119
    %p125 = scmp.eq.s32.totalorder %s10, 0
    %p126 = por %p124, %p125
    %p127 = scmp.ne.s32.totalorder %s116, %s119
    %p128 = scmp.eq.s32.totalorder %s15, 1
    %p129 = por %p127, %p128
    %p130 = scmp.ne.s32.totalorder %s119, %s120
    %p131 = scmp.eq.s32.totalorder %s15, 0
    %p132 = por %p130, %p131
    %p133 = scmp.ne.s32.totalorder %s119, %s120
    %p134 = scmp.eq.s32.totalorder %s16, 1
    %p135 = por %p133, %p134
    %p137 = scmp.ne.s32.totalorder %s120, %s136
    %p138 = scmp.eq.s32.totalorder %s16, 0
    %p139 = por %p137, %p138
    %p140 = scmp.le.s32.totalorder 1, %s10
    %p141 = scmp.lt.s32.totalorder %s10, 3
    %p142 = pnand %p140, %p141
    %p143 = pneg %p142
    // Predicated region
    $region9: #{depthwise_conv_block.2} parent=5 // pred_check
      _
    $region10: #{depthwise_conv_block.2} parent=5 // pred_check_branch
      %145 = sbr.rel (%p142) target = $region12
    $region11: #{depthwise_conv_block.2} parent=5 // pred_region
      %s146 = ssub.s32 %s10, 1
      // Predicated region
      $region13: #{depthwise_conv_block.2} parent=11 // pred_check
        %p147 = pneg %p76
      $region14: #{depthwise_conv_block.2} parent=11 // pred_check_branch
        %149 = sbr.rel (%p147) target = $region16
      $region15: #{depthwise_conv_block.2} parent=11 // pred_region
        %p150 = scmp.lt.s32.totalorder %s19, 0
        %s151 = scalar_select %p150, %s19, 0
        %s152 = smul.addr %s151, 4
        %s153 = scalar_lea.vmem %s1, %s152
      $region16: #{depthwise_conv_block.2} parent=11 // pred_fallthru
        _
    $region12: #{depthwise_conv_block.2} parent=5 // pred_fallthru
      _
    %p154 = scmp.lt.s32.totalorder %s10, 2
    // Predicated region
    $region17: #{depthwise_conv_block.2} parent=5 // pred_check
      %p155 = pneg %p154
    $region18: #{depthwise_conv_block.2} parent=5 // pred_check_branch
      %157 = sbr.rel (%p155) target = $region20
    $region19: #{depthwise_conv_block.2} parent=5 // pred_region
      // Predicated region
      $region21: #{depthwise_conv_block.2} parent=19 // pred_check
        %p158 = pneg %p44
      $region22: #{depthwise_conv_block.2} parent=19 // pred_check_branch
        %160 = sbr.rel (%p158) target = $region24
      $region23: #{depthwise_conv_block.2} parent=19 // pred_region
        %p161 = scmp.lt.s32.totalorder %s18, 1
        %s162 = scalar_select %p161, %s18, 1
        %p163 = scmp.lt.s32.totalorder %s17, 0
        %s164 = scalar_select %p163, %s17, 0
        %s165 = smul.addr %s162, 32
        %s166 = sadd.s32 %s164, %s165
        %s167 = smul.addr %s166, 8
        %s168 = scalar_lea.vmem %s0, %s167
      $region24: #{depthwise_conv_block.2} parent=19 // pred_fallthru
        _
    $region20: #{depthwise_conv_block.2} parent=5 // pred_fallthru
      _
    %p169 = scmp.le.s32.totalorder 1, %s10
    %p170 = scmp.lt.s32.totalorder %s10, 3
    %p171 = pnand %p169, %p170
    %p172 = pneg %p171
    // Predicated region
    $region25: #{depthwise_conv_block.2} parent=5 // pred_check
      _
    $region26: #{depthwise_conv_block.2} parent=5 // pred_check_branch
      %174 = sbr.rel (%p171) target = $region28
    $region27: #{depthwise_conv_block.2} parent=5 // pred_region
      %s175 = ssub.s32 %s10, 1
      %p176 = scmp.lt.s32.totalorder %s20, 1
      %s177 = scalar_select %p176, %s20, 1
      %p178 = scmp.lt.s32.totalorder %s19, 0
      %s179 = scalar_select %p178, %s19, 0
      %s180 = smul.addr %s177, 32
      %s181 = sadd.s32 %s179, %s180
      %s182 = smul.addr %s181, 8
      %s183 = scalar_lea.vmem %s0, %s182
      %p184 = pneg %p50
      %p185 = pneg %p47
      %p186 = scmp.lt.s32.totalorder %s19, 0
      %s187 = scalar_select %p186, %s19, 0
      %s188 = smul.addr %s187, 4
      %s189 = scalar_lea.vmem %s1, %s188
      %p190 = pneg %p76
      %p191 = pneg %p73
      %p192 = pneg %p104
      %p193 = pneg %p101
      %p194 = scmp.lt.s32.totalorder %s20, 1
      %s195 = scalar_select %p194, %s20, 1
      %p196 = scmp.lt.s32.totalorder %s19, 0
      %s197 = scalar_select %p196, %s19, 0
      %s198 = sadd.s32 %s197, %s195
      %s199 = scalar_lea.vmem %s2, %s198
      %p200 = pneg %p132
      %p201 = pneg %p129
      %p202 = scmp.lt.s32.totalorder %s20, 1
      %s203 = scalar_select %p202, %s20, 1
      %p204 = scmp.lt.s32.totalorder %s19, 0
      %s205 = scalar_select %p204, %s19, 0
      %s206 = sadd.s32 %s205, %s203
      %s207 = scalar_lea.vmem %s3, %s206
      %p208 = scmp.lt.s32.totalorder %s20, 1
      %s209 = scalar_select %p208, %s20, 1
      %p210 = scmp.lt.s32.totalorder %s19, 0
      %s211 = scalar_select %p210, %s19, 0
      %s212 = smul.addr %s209, 32
      %s213 = sadd.s32 %s211, %s212
      %s214 = smul.addr %s213, 8
      %s215 = scalar_lea.vmem %s0, %s214
      %p216 = scmp.lt.s32.totalorder %s19, 0
      %s217 = scalar_select %p216, %s19, 0
      %s218 = smul.addr %s217, 4
      %s219 = scalar_lea.vmem %s1, %s218
      %p220 = scmp.lt.s32.totalorder %s20, 1
      %s221 = scalar_select %p220, %s20, 1
      %p222 = scmp.lt.s32.totalorder %s19, 0
      %s223 = scalar_select %p222, %s19, 0
      %s224 = sadd.s32 %s223, %s221
      %s225 = scalar_lea.vmem %s2, %s224
      %p226 = scmp.lt.s32.totalorder %s20, 1
      %s227 = scalar_select %p226, %s20, 1
      %p228 = scmp.lt.s32.totalorder %s19, 0
      %s229 = scalar_select %p228, %s19, 0
      %s230 = sadd.s32 %s229, %s227
      %s231 = scalar_lea.vmem %s3, %s230
      %v232 = vld [vmem:[%s215] sm:$0xff]
      %v233 = vld [vmem:[%s215 + $0x8] sm:$0xff]
      %v234 = vld [vmem:[%s215 + $0x10] sm:$0xff]
      %v235 = vld [vmem:[%s215 + $0x18] sm:$0xff]
      %v236 = vld [vmem:[%s215 + $0x20] sm:$0xff]
      %v237 = vld [vmem:[%s215 + $0x28] sm:$0xff]
      %v238 = vld [vmem:[%s215 + $0x30] sm:$0xff]
      %v239 = vld [vmem:[%s215 + $0x38] sm:$0xff]
      %v240 = vld [vmem:[%s215 + $0x40] sm:$0xff]
      %v241 = vld [vmem:[%s215 + $0x48] sm:$0xff]
      %v242 = vld [vmem:[%s215 + $0x50] sm:$0xff]
      %v243 = vld [vmem:[%s215 + $0x58] sm:$0xff]
      %v244 = vld [vmem:[%s215 + $0x60] sm:$0xff]
      %v245 = vld [vmem:[%s215 + $0x68] sm:$0xff]
      %v246 = vld [vmem:[%s215 + $0x70] sm:$0xff]
      %v247 = vld [vmem:[%s215 + $0x78] sm:$0xff]
      %v248 = vld [vmem:[%s215 + $0x80] sm:$0xff]
      %v249 = vld [vmem:[%s215 + $0x88] sm:$0xff]
      %v250 = vld [vmem:[%s215 + $0x90] sm:$0xff]
      %v251 = vld [vmem:[%s215 + $0x98] sm:$0xff]
      %v252 = vld [vmem:[%s215 + $0xa0] sm:$0xff]
      %v253 = vld [vmem:[%s215 + $0xa8] sm:$0xff]
      %v254 = vld [vmem:[%s215 + $0xb0] sm:$0xff]
      %v255 = vld [vmem:[%s215 + $0xb8] sm:$0xff]
      %v256 = vld [vmem:[%s215 + $0xc0] sm:$0xff]
      %v257 = vld [vmem:[%s215 + $0xc8] sm:$0xff]
      %v258 = vld [vmem:[%s215 + $0xd0] sm:$0xff]
      %v259 = vld [vmem:[%s215 + $0xd8] sm:$0xff]
      %v260 = vld [vmem:[%s215 + $0xe0] sm:$0xff]
      %v261 = vld [vmem:[%s215 + $0xe8] sm:$0xff]
      %v262 = vld [vmem:[%s215 + $0xf0] sm:$0xff]
      %v263 = vld [vmem:[%s215 + $0xf8] sm:$0xff]
      %v264 = vld [vmem:[%s219] sm:$0x7]
      %v265 = vld [vmem:[%s219 + $0x4] sm:$0x7]
      %v266 = vld [vmem:[%s219 + $0x8] sm:$0x7]
      %v267 = vlaneseq
      %v268 = vshrl.u32 %v267, 7
      %v269 = vadd.s32 %v268, 8
      %vm270 = vcmp.ge.s32.totalorder %v268, 1
      %vm271 = vcmp.ge.s32.totalorder %v269, 1
      %vm272 = vcmp.lt.s32.totalorder %v268, 15
      %vm273 = vcmp.lt.s32.totalorder %v269, 15
      %v274 = vrot.slane %v232, 7
      %v275 = vrot.slane %v234, 7
      %v276 = vrot.slane %v236, 7
      %v277 = vrot.slane %v238, 7
      %v278 = vrot.slane %v240, 7
      %v279 = vrot.slane %v242, 7
      %v280 = vrot.slane %v244, 7
      %v281 = vrot.slane %v246, 7
      %v282 = vrot.slane %v248, 7
      %v283 = vrot.slane %v250, 7
      %v284 = vrot.slane %v252, 7
      %v285 = vrot.slane %v254, 7
      %v286 = vrot.slane %v256, 7
      %v287 = vrot.slane %v258, 7
      %v288 = vrot.slane %v260, 7
      %v289 = vrot.slane %v262, 7
      %v290 = vrot.slane %v233, 7
      %v291 = vrot.slane %v235, 7
      %v292 = vrot.slane %v237, 7
      %v293 = vrot.slane %v239, 7
      %v294 = vrot.slane %v241, 7
      %v295 = vrot.slane %v243, 7
      %v296 = vrot.slane %v245, 7
      %v297 = vrot.slane %v247, 7
      %v298 = vrot.slane %v249, 7
      %v299 = vrot.slane %v251, 7
      %v300 = vrot.slane %v253, 7
      %v301 = vrot.slane %v255, 7
      %v302 = vrot.slane %v257, 7
      %v303 = vrot.slane %v259, 7
      %v304 = vrot.slane %v261, 7
      %v305 = vrot.slane %v263, 7
      %vm306 = vcmp.lt.s32.totalorder %v268, 1
      %v307 = vsel %vm306, %v274, %v290
      %v308 = vsel %vm306, %v275, %v291
      %v309 = vsel %vm306, %v276, %v292
      %v310 = vsel %vm306, %v277, %v293
      %v311 = vsel %vm306, %v278, %v294
      %v312 = vsel %vm306, %v279, %v295
      %v313 = vsel %vm306, %v280, %v296
      %v314 = vsel %vm306, %v281, %v297
      %v315 = vsel %vm306, %v282, %v298
      %v316 = vsel %vm306, %v283, %v299
      %v317 = vsel %vm306, %v284, %v300
      %v318 = vsel %vm306, %v285, %v301
      %v319 = vsel %vm306, %v286, %v302
      %v320 = vsel %vm306, %v287, %v303
      %v321 = vsel %vm306, %v288, %v304
      %v322 = vsel %vm306, %v289, %v305
      %v323 = vsel %vm306, %v290, %v274
      %v324 = vsel %vm306, %v291, %v275
      %v325 = vsel %vm306, %v292, %v276
      %v326 = vsel %vm306, %v293, %v277
      %v327 = vsel %vm306, %v294, %v278
      %v328 = vsel %vm306, %v295, %v279
      %v329 = vsel %vm306, %v296, %v280
      %v330 = vsel %vm306, %v297, %v281
      %v331 = vsel %vm306, %v298, %v282
      %v332 = vsel %vm306, %v299, %v283
      %v333 = vsel %vm306, %v300, %v284
      %v334 = vsel %vm306, %v301, %v285
      %v335 = vsel %vm306, %v302, %v286
      %v336 = vsel %vm306, %v303, %v287
      %v337 = vsel %vm306, %v304, %v288
      %v338 = vsel %vm306, %v305, %v289
      %v339 = vsel %vm270, %v323, 0.0
      %v340 = vsel %vm271, %v307, 0.0
      %v341 = vsel %vm270, %v324, 0.0
      %v342 = vsel %vm271, %v308, 0.0
      %v343 = vsel %vm270, %v325, 0.0
      %v344 = vsel %vm271, %v309, 0.0
      %v345 = vsel %vm270, %v326, 0.0
      %v346 = vsel %vm271, %v310, 0.0
      %v347 = vsel %vm270, %v327, 0.0
      %v348 = vsel %vm271, %v311, 0.0
      %v349 = vsel %vm270, %v328, 0.0
      %v350 = vsel %vm271, %v312, 0.0
      %v351 = vsel %vm270, %v329, 0.0
      %v352 = vsel %vm271, %v313, 0.0
      %v353 = vsel %vm270, %v330, 0.0
      %v354 = vsel %vm271, %v314, 0.0
      %v355 = vsel %vm270, %v331, 0.0
      %v356 = vsel %vm271, %v315, 0.0
      %v357 = vsel %vm270, %v332, 0.0
      %v358 = vsel %vm271, %v316, 0.0
      %v359 = vsel %vm270, %v333, 0.0
      %v360 = vsel %vm271, %v317, 0.0
      %v361 = vsel %vm270, %v334, 0.0
      %v362 = vsel %vm271, %v318, 0.0
      %v363 = vsel %vm270, %v335, 0.0
      %v364 = vsel %vm271, %v319, 0.0
      %v365 = vsel %vm270, %v336, 0.0
      %v366 = vsel %vm271, %v320, 0.0
      %v367 = vsel %vm270, %v337, 0.0
      %v368 = vsel %vm271, %v321, 0.0
      %v369 = vsel %vm270, %v338, 0.0
      %v370 = vsel %vm271, %v322, 0.0
      %v371 = vrot.slane %v232, 1
      %v372 = vrot.slane %v234, 1
      %v373 = vrot.slane %v236, 1
      %v374 = vrot.slane %v238, 1
      %v375 = vrot.slane %v240, 1
      %v376 = vrot.slane %v242, 1
      %v377 = vrot.slane %v244, 1
      %v378 = vrot.slane %v246, 1
      %v379 = vrot.slane %v248, 1
      %v380 = vrot.slane %v250, 1
      %v381 = vrot.slane %v252, 1
      %v382 = vrot.slane %v254, 1
      %v383 = vrot.slane %v256, 1
      %v384 = vrot.slane %v258, 1
      %v385 = vrot.slane %v260, 1
      %v386 = vrot.slane %v262, 1
      %v387 = vrot.slane %v233, 1
      %v388 = vrot.slane %v235, 1
      %v389 = vrot.slane %v237, 1
      %v390 = vrot.slane %v239, 1
      %v391 = vrot.slane %v241, 1
      %v392 = vrot.slane %v243, 1
      %v393 = vrot.slane %v245, 1
      %v394 = vrot.slane %v247, 1
      %v395 = vrot.slane %v249, 1
      %v396 = vrot.slane %v251, 1
      %v397 = vrot.slane %v253, 1
      %v398 = vrot.slane %v255, 1
      %v399 = vrot.slane %v257, 1
      %v400 = vrot.slane %v259, 1
      %v401 = vrot.slane %v261, 1
      %v402 = vrot.slane %v263, 1
      %vm403 = vcmp.lt.s32.totalorder %v268, 7
      %v404 = vsel %vm403, %v371, %v387
      %v405 = vsel %vm403, %v372, %v388
      %v406 = vsel %vm403, %v373, %v389
      %v407 = vsel %vm403, %v374, %v390
      %v408 = vsel %vm403, %v375, %v391
      %v409 = vsel %vm403, %v376, %v392
      %v410 = vsel %vm403, %v377, %v393
      %v411 = vsel %vm403, %v378, %v394
      %v412 = vsel %vm403, %v379, %v395
      %v413 = vsel %vm403, %v380, %v396
      %v414 = vsel %vm403, %v381, %v397
      %v415 = vsel %vm403, %v382, %v398
      %v416 = vsel %vm403, %v383, %v399
      %v417 = vsel %vm403, %v384, %v400
      %v418 = vsel %vm403, %v385, %v401
      %v419 = vsel %vm403, %v386, %v402
      %v420 = vsel %vm403, %v387, %v371
      %v421 = vsel %vm403, %v388, %v372
      %v422 = vsel %vm403, %v389, %v373
      %v423 = vsel %vm403, %v390, %v374
      %v424 = vsel %vm403, %v391, %v375
      %v425 = vsel %vm403, %v392, %v376
      %v426 = vsel %vm403, %v393, %v377
      %v427 = vsel %vm403, %v394, %v378
      %v428 = vsel %vm403, %v395, %v379
      %v429 = vsel %vm403, %v396, %v380
      %v430 = vsel %vm403, %v397, %v381
      %v431 = vsel %vm403, %v398, %v382
      %v432 = vsel %vm403, %v399, %v383
      %v433 = vsel %vm403, %v400, %v384
      %v434 = vsel %vm403, %v401, %v385
      %v435 = vsel %vm403, %v402, %v386
      %v436 = vsel %vm272, %v404, 0.0
      %v437 = vsel %vm273, %v420, 0.0
      %v438 = vsel %vm272, %v405, 0.0
      %v439 = vsel %vm273, %v421, 0.0
      %v440 = vsel %vm272, %v406, 0.0
      %v441 = vsel %vm273, %v422, 0.0
      %v442 = vsel %vm272, %v407, 0.0
      %v443 = vsel %vm273, %v423, 0.0
      %v444 = vsel %vm272, %v408, 0.0
      %v445 = vsel %vm273, %v424, 0.0
      %v446 = vsel %vm272, %v409, 0.0
      %v447 = vsel %vm273, %v425, 0.0
      %v448 = vsel %vm272, %v410, 0.0
      %v449 = vsel %vm273, %v426, 0.0
      %v450 = vsel %vm272, %v411, 0.0
      %v451 = vsel %vm273, %v427, 0.0
      %v452 = vsel %vm272, %v412, 0.0
      %v453 = vsel %vm273, %v428, 0.0
      %v454 = vsel %vm272, %v413, 0.0
      %v455 = vsel %vm273, %v429, 0.0
      %v456 = vsel %vm272, %v414, 0.0
      %v457 = vsel %vm273, %v430, 0.0
      %v458 = vsel %vm272, %v415, 0.0
      %v459 = vsel %vm273, %v431, 0.0
      %v460 = vsel %vm272, %v416, 0.0
      %v461 = vsel %vm273, %v432, 0.0
      %v462 = vsel %vm272, %v417, 0.0
      %v463 = vsel %vm273, %v433, 0.0
      %v464 = vsel %vm272, %v418, 0.0
      %v465 = vsel %vm273, %v434, 0.0
      %v466 = vsel %vm272, %v419, 0.0
      %v467 = vsel %vm273, %v435, 0.0
      %v468 = vperm.slane %v264, 0
      %v469 = vmul.f32 %v339, %v468
      %v470 = vmul.f32 %v340, %v468
      %v471 = vmul.f32 %v341, %v468
      %v472 = vmul.f32 %v342, %v468
      %v473 = vmul.f32 %v343, %v468
      %v474 = vmul.f32 %v344, %v468
      %v475 = vmul.f32 %v345, %v468
      %v476 = vmul.f32 %v346, %v468
      %v477 = vmul.f32 %v347, %v468
      %v478 = vmul.f32 %v348, %v468
      %v479 = vmul.f32 %v349, %v468
      %v480 = vmul.f32 %v350, %v468
      %v481 = vmul.f32 %v351, %v468
      %v482 = vmul.f32 %v352, %v468
      %v483 = vmul.f32 %v353, %v468
      %v484 = vmul.f32 %v354, %v468
      %v485 = vmul.f32 %v355, %v468
      %v486 = vmul.f32 %v356, %v468
      %v487 = vmul.f32 %v357, %v468
      %v488 = vmul.f32 %v358, %v468
      %v489 = vmul.f32 %v359, %v468
      %v490 = vmul.f32 %v360, %v468
      %v491 = vmul.f32 %v361, %v468
      %v492 = vmul.f32 %v362, %v468
      %v493 = vmul.f32 %v363, %v468
      %v494 = vmul.f32 %v364, %v468
      %v495 = vmul.f32 %v365, %v468
      %v496 = vmul.f32 %v366, %v468
      %v497 = vmul.f32 %v367, %v468
      %v498 = vmul.f32 %v368, %v468
      %v499 = vperm.slane %v264, 1
      %v500 = vmul.f32 %v232, %v499
      %v501 = vmul.f32 %v233, %v499
      %v502 = vmul.f32 %v234, %v499
      %v503 = vmul.f32 %v235, %v499
      %v504 = vmul.f32 %v236, %v499
      %v505 = vmul.f32 %v237, %v499
      %v506 = vmul.f32 %v238, %v499
      %v507 = vmul.f32 %v239, %v499
      %v508 = vmul.f32 %v240, %v499
      %v509 = vmul.f32 %v241, %v499
      %v510 = vmul.f32 %v242, %v499
      %v511 = vmul.f32 %v243, %v499
      %v512 = vmul.f32 %v244, %v499
      %v513 = vmul.f32 %v245, %v499
      %v514 = vmul.f32 %v246, %v499
      %v515 = vmul.f32 %v247, %v499
      %v516 = vmul.f32 %v248, %v499
      %v517 = vmul.f32 %v249, %v499
      %v518 = vmul.f32 %v250, %v499
      %v519 = vmul.f32 %v251, %v499
      %v520 = vmul.f32 %v252, %v499
      %v521 = vmul.f32 %v253, %v499
      %v522 = vmul.f32 %v254, %v499
      %v523 = vmul.f32 %v255, %v499
      %v524 = vmul.f32 %v256, %v499
      %v525 = vmul.f32 %v257, %v499
      %v526 = vmul.f32 %v258, %v499
      %v527 = vmul.f32 %v259, %v499
      %v528 = vmul.f32 %v260, %v499
      %v529 = vmul.f32 %v261, %v499
      %v530 = vadd.f32 %v469, %v500
      %v531 = vadd.f32 %v470, %v501
      %v532 = vadd.f32 %v471, %v502
      %v533 = vadd.f32 %v472, %v503
      %v534 = vadd.f32 %v473, %v504
      %v535 = vadd.f32 %v474, %v505
      %v536 = vadd.f32 %v475, %v506
      %v537 = vadd.f32 %v476, %v507
      %v538 = vadd.f32 %v477, %v508
      %v539 = vadd.f32 %v478, %v509
      %v540 = vadd.f32 %v479, %v510
      %v541 = vadd.f32 %v480, %v511
      %v542 = vadd.f32 %v481, %v512
      %v543 = vadd.f32 %v482, %v513
      %v544 = vadd.f32 %v483, %v514
      %v545 = vadd.f32 %v484, %v515
      %v546 = vadd.f32 %v485, %v516
      %v547 = vadd.f32 %v486, %v517
      %v548 = vadd.f32 %v487, %v518
      %v549 = vadd.f32 %v488, %v519
      %v550 = vadd.f32 %v489, %v520
      %v551 = vadd.f32 %v490, %v521
      %v552 = vadd.f32 %v491, %v522
      %v553 = vadd.f32 %v492, %v523
      %v554 = vadd.f32 %v493, %v524
      %v555 = vadd.f32 %v494, %v525
      %v556 = vadd.f32 %v495, %v526
      %v557 = vadd.f32 %v496, %v527
      %v558 = vadd.f32 %v497, %v528
      %v559 = vadd.f32 %v498, %v529
      %v560 = vperm.slane %v264, 2
      %v561 = vmul.f32 %v436, %v560
      %v562 = vmul.f32 %v437, %v560
      %v563 = vmul.f32 %v438, %v560
      %v564 = vmul.f32 %v439, %v560
      %v565 = vmul.f32 %v440, %v560
      %v566 = vmul.f32 %v441, %v560
      %v567 = vmul.f32 %v442, %v560
      %v568 = vmul.f32 %v443, %v560
      %v569 = vmul.f32 %v444, %v560
      %v570 = vmul.f32 %v445, %v560
      %v571 = vmul.f32 %v446, %v560
      %v572 = vmul.f32 %v447, %v560
      %v573 = vmul.f32 %v448, %v560
      %v574 = vmul.f32 %v449, %v560
      %v575 = vmul.f32 %v450, %v560
      %v576 = vmul.f32 %v451, %v560
      %v577 = vmul.f32 %v452, %v560
      %v578 = vmul.f32 %v453, %v560
      %v579 = vmul.f32 %v454, %v560
      %v580 = vmul.f32 %v455, %v560
      %v581 = vmul.f32 %v456, %v560
      %v582 = vmul.f32 %v457, %v560
      %v583 = vmul.f32 %v458, %v560
      %v584 = vmul.f32 %v459, %v560
      %v585 = vmul.f32 %v460, %v560
      %v586 = vmul.f32 %v461, %v560
      %v587 = vmul.f32 %v462, %v560
      %v588 = vmul.f32 %v463, %v560
      %v589 = vmul.f32 %v464, %v560
      %v590 = vmul.f32 %v465, %v560
      %v591 = vadd.f32 %v530, %v561
      %v592 = vadd.f32 %v531, %v562
      %v593 = vadd.f32 %v532, %v563
      %v594 = vadd.f32 %v533, %v564
      %v595 = vadd.f32 %v534, %v565
      %v596 = vadd.f32 %v535, %v566
      %v597 = vadd.f32 %v536, %v567
      %v598 = vadd.f32 %v537, %v568
      %v599 = vadd.f32 %v538, %v569
      %v600 = vadd.f32 %v539, %v570
      %v601 = vadd.f32 %v540, %v571
      %v602 = vadd.f32 %v541, %v572
      %v603 = vadd.f32 %v542, %v573
      %v604 = vadd.f32 %v543, %v574
      %v605 = vadd.f32 %v544, %v575
      %v606 = vadd.f32 %v545, %v576
      %v607 = vadd.f32 %v546, %v577
      %v608 = vadd.f32 %v547, %v578
      %v609 = vadd.f32 %v548, %v579
      %v610 = vadd.f32 %v549, %v580
      %v611 = vadd.f32 %v550, %v581
      %v612 = vadd.f32 %v551, %v582
      %v613 = vadd.f32 %v552, %v583
      %v614 = vadd.f32 %v553, %v584
      %v615 = vadd.f32 %v554, %v585
      %v616 = vadd.f32 %v555, %v586
      %v617 = vadd.f32 %v556, %v587
      %v618 = vadd.f32 %v557, %v588
      %v619 = vadd.f32 %v558, %v589
      %v620 = vadd.f32 %v559, %v590
      %v621 = vadd.f32 %v591, 0.0
      %v622 = vadd.f32 %v592, 0.0
      %v623 = vadd.f32 %v593, 0.0
      %v624 = vadd.f32 %v594, 0.0
      %v625 = vadd.f32 %v595, 0.0
      %v626 = vadd.f32 %v596, 0.0
      %v627 = vadd.f32 %v597, 0.0
      %v628 = vadd.f32 %v598, 0.0
      %v629 = vadd.f32 %v599, 0.0
      %v630 = vadd.f32 %v600, 0.0
      %v631 = vadd.f32 %v601, 0.0
      %v632 = vadd.f32 %v602, 0.0
      %v633 = vadd.f32 %v603, 0.0
      %v634 = vadd.f32 %v604, 0.0
      %v635 = vadd.f32 %v605, 0.0
      %v636 = vadd.f32 %v606, 0.0
      %v637 = vadd.f32 %v607, 0.0
      %v638 = vadd.f32 %v608, 0.0
      %v639 = vadd.f32 %v609, 0.0
      %v640 = vadd.f32 %v610, 0.0
      %v641 = vadd.f32 %v611, 0.0
      %v642 = vadd.f32 %v612, 0.0
      %v643 = vadd.f32 %v613, 0.0
      %v644 = vadd.f32 %v614, 0.0
      %v645 = vadd.f32 %v615, 0.0
      %v646 = vadd.f32 %v616, 0.0
      %v647 = vadd.f32 %v617, 0.0
      %v648 = vadd.f32 %v618, 0.0
      %v649 = vadd.f32 %v619, 0.0
      %v650 = vadd.f32 %v620, 0.0
      %v651 = vperm.slane %v265, 0
      %v652 = vmul.f32 %v339, %v651
      %v653 = vmul.f32 %v340, %v651
      %v654 = vmul.f32 %v341, %v651
      %v655 = vmul.f32 %v342, %v651
      %v656 = vmul.f32 %v343, %v651
      %v657 = vmul.f32 %v344, %v651
      %v658 = vmul.f32 %v345, %v651
      %v659 = vmul.f32 %v346, %v651
      %v660 = vmul.f32 %v347, %v651
      %v661 = vmul.f32 %v348, %v651
      %v662 = vmul.f32 %v349, %v651
      %v663 = vmul.f32 %v350, %v651
      %v664 = vmul.f32 %v351, %v651
      %v665 = vmul.f32 %v352, %v651
      %v666 = vmul.f32 %v353, %v651
      %v667 = vmul.f32 %v354, %v651
      %v668 = vmul.f32 %v355, %v651
      %v669 = vmul.f32 %v356, %v651
      %v670 = vmul.f32 %v357, %v651
      %v671 = vmul.f32 %v358, %v651
      %v672 = vmul.f32 %v359, %v651
      %v673 = vmul.f32 %v360, %v651
      %v674 = vmul.f32 %v361, %v651
      %v675 = vmul.f32 %v362, %v651
      %v676 = vmul.f32 %v363, %v651
      %v677 = vmul.f32 %v364, %v651
      %v678 = vmul.f32 %v365, %v651
      %v679 = vmul.f32 %v366, %v651
      %v680 = vmul.f32 %v367, %v651
      %v681 = vmul.f32 %v368, %v651
      %v682 = vmul.f32 %v369, %v651
      %v683 = vmul.f32 %v370, %v651
      %v684 = vperm.slane %v265, 1
      %v685 = vmul.f32 %v232, %v684
      %v686 = vmul.f32 %v233, %v684
      %v687 = vmul.f32 %v234, %v684
      %v688 = vmul.f32 %v235, %v684
      %v689 = vmul.f32 %v236, %v684
      %v690 = vmul.f32 %v237, %v684
      %v691 = vmul.f32 %v238, %v684
      %v692 = vmul.f32 %v239, %v684
      %v693 = vmul.f32 %v240, %v684
      %v694 = vmul.f32 %v241, %v684
      %v695 = vmul.f32 %v242, %v684
      %v696 = vmul.f32 %v243, %v684
      %v697 = vmul.f32 %v244, %v684
      %v698 = vmul.f32 %v245, %v684
      %v699 = vmul.f32 %v246, %v684
      %v700 = vmul.f32 %v247, %v684
      %v701 = vmul.f32 %v248, %v684
      %v702 = vmul.f32 %v249, %v684
      %v703 = vmul.f32 %v250, %v684
      %v704 = vmul.f32 %v251, %v684
      %v705 = vmul.f32 %v252, %v684
      %v706 = vmul.f32 %v253, %v684
      %v707 = vmul.f32 %v254, %v684
      %v708 = vmul.f32 %v255, %v684
      %v709 = vmul.f32 %v256, %v684
      %v710 = vmul.f32 %v257, %v684
      %v711 = vmul.f32 %v258, %v684
      %v712 = vmul.f32 %v259, %v684
      %v713 = vmul.f32 %v260, %v684
      %v714 = vmul.f32 %v261, %v684
      %v715 = vmul.f32 %v262, %v684
      %v716 = vmul.f32 %v263, %v684
      %v717 = vadd.f32 %v652, %v685
      %v718 = vadd.f32 %v653, %v686
      %v719 = vadd.f32 %v654, %v687
      %v720 = vadd.f32 %v655, %v688
      %v721 = vadd.f32 %v656, %v689
      %v722 = vadd.f32 %v657, %v690
      %v723 = vadd.f32 %v658, %v691
      %v724 = vadd.f32 %v659, %v692
      %v725 = vadd.f32 %v660, %v693
      %v726 = vadd.f32 %v661, %v694
      %v727 = vadd.f32 %v662, %v695
      %v728 = vadd.f32 %v663, %v696
      %v729 = vadd.f32 %v664, %v697
      %v730 = vadd.f32 %v665, %v698
      %v731 = vadd.f32 %v666, %v699
      %v732 = vadd.f32 %v667, %v700
      %v733 = vadd.f32 %v668, %v701
      %v734 = vadd.f32 %v669, %v702
      %v735 = vadd.f32 %v670, %v703
      %v736 = vadd.f32 %v671, %v704
      %v737 = vadd.f32 %v672, %v705
      %v738 = vadd.f32 %v673, %v706
      %v739 = vadd.f32 %v674, %v707
      %v740 = vadd.f32 %v675, %v708
      %v741 = vadd.f32 %v676, %v709
      %v742 = vadd.f32 %v677, %v710
      %v743 = vadd.f32 %v678, %v711
      %v744 = vadd.f32 %v679, %v712
      %v745 = vadd.f32 %v680, %v713
      %v746 = vadd.f32 %v681, %v714
      %v747 = vadd.f32 %v682, %v715
      %v748 = vadd.f32 %v683, %v716
      %v749 = vperm.slane %v265, 2
      %v750 = vmul.f32 %v436, %v749
      %v751 = vmul.f32 %v437, %v749
      %v752 = vmul.f32 %v438, %v749
      %v753 = vmul.f32 %v439, %v749
      %v754 = vmul.f32 %v440, %v749
      %v755 = vmul.f32 %v441, %v749
      %v756 = vmul.f32 %v442, %v749
      %v757 = vmul.f32 %v443, %v749
      %v758 = vmul.f32 %v444, %v749
      %v759 = vmul.f32 %v445, %v749
      %v760 = vmul.f32 %v446, %v749
      %v761 = vmul.f32 %v447, %v749
      %v762 = vmul.f32 %v448, %v749
      %v763 = vmul.f32 %v449, %v749
      %v764 = vmul.f32 %v450, %v749
      %v765 = vmul.f32 %v451, %v749
      %v766 = vmul.f32 %v452, %v749
      %v767 = vmul.f32 %v453, %v749
      %v768 = vmul.f32 %v454, %v749
      %v769 = vmul.f32 %v455, %v749
      %v770 = vmul.f32 %v456, %v749
      %v771 = vmul.f32 %v457, %v749
      %v772 = vmul.f32 %v458, %v749
      %v773 = vmul.f32 %v459, %v749
      %v774 = vmul.f32 %v460, %v749
      %v775 = vmul.f32 %v461, %v749
      %v776 = vmul.f32 %v462, %v749
      %v777 = vmul.f32 %v463, %v749
      %v778 = vmul.f32 %v464, %v749
      %v779 = vmul.f32 %v465, %v749
      %v780 = vmul.f32 %v466, %v749
      %v781 = vmul.f32 %v467, %v749
      %v782 = vadd.f32 %v717, %v750
      %v783 = vadd.f32 %v718, %v751
      %v784 = vadd.f32 %v719, %v752
      %v785 = vadd.f32 %v720, %v753
      %v786 = vadd.f32 %v721, %v754
      %v787 = vadd.f32 %v722, %v755
      %v788 = vadd.f32 %v723, %v756
      %v789 = vadd.f32 %v724, %v757
      %v790 = vadd.f32 %v725, %v758
      %v791 = vadd.f32 %v726, %v759
      %v792 = vadd.f32 %v727, %v760
      %v793 = vadd.f32 %v728, %v761
      %v794 = vadd.f32 %v729, %v762
      %v795 = vadd.f32 %v730, %v763
      %v796 = vadd.f32 %v731, %v764
      %v797 = vadd.f32 %v732, %v765
      %v798 = vadd.f32 %v733, %v766
      %v799 = vadd.f32 %v734, %v767
      %v800 = vadd.f32 %v735, %v768
      %v801 = vadd.f32 %v736, %v769
      %v802 = vadd.f32 %v737, %v770
      %v803 = vadd.f32 %v738, %v771
      %v804 = vadd.f32 %v739, %v772
      %v805 = vadd.f32 %v740, %v773
      %v806 = vadd.f32 %v741, %v774
      %v807 = vadd.f32 %v742, %v775
      %v808 = vadd.f32 %v743, %v776
      %v809 = vadd.f32 %v744, %v777
      %v810 = vadd.f32 %v745, %v778
      %v811 = vadd.f32 %v746, %v779
      %v812 = vadd.f32 %v747, %v780
      %v813 = vadd.f32 %v748, %v781
      %v814 = vadd.f32 %v782, 0.0
      %v815 = vadd.f32 %v783, 0.0
      %v816 = vadd.f32 %v621, %v784
      %v817 = vadd.f32 %v622, %v785
      %v818 = vadd.f32 %v623, %v786
      %v819 = vadd.f32 %v624, %v787
      %v820 = vadd.f32 %v625, %v788
      %v821 = vadd.f32 %v626, %v789
      %v822 = vadd.f32 %v627, %v790
      %v823 = vadd.f32 %v628, %v791
      %v824 = vadd.f32 %v629, %v792
      %v825 = vadd.f32 %v630, %v793
      %v826 = vadd.f32 %v631, %v794
      %v827 = vadd.f32 %v632, %v795
      %v828 = vadd.f32 %v633, %v796
      %v829 = vadd.f32 %v634, %v797
      %v830 = vadd.f32 %v635, %v798
      %v831 = vadd.f32 %v636, %v799
      %v832 = vadd.f32 %v637, %v800
      %v833 = vadd.f32 %v638, %v801
      %v834 = vadd.f32 %v639, %v802
      %v835 = vadd.f32 %v640, %v803
      %v836 = vadd.f32 %v641, %v804
      %v837 = vadd.f32 %v642, %v805
      %v838 = vadd.f32 %v643, %v806
      %v839 = vadd.f32 %v644, %v807
      %v840 = vadd.f32 %v645, %v808
      %v841 = vadd.f32 %v646, %v809
      %v842 = vadd.f32 %v647, %v810
      %v843 = vadd.f32 %v648, %v811
      %v844 = vadd.f32 %v649, %v812
      %v845 = vadd.f32 %v650, %v813
      %v846 = vperm.slane %v266, 0
      %v847 = vmul.f32 %v341, %v846
      %v848 = vmul.f32 %v342, %v846
      %v849 = vmul.f32 %v343, %v846
      %v850 = vmul.f32 %v344, %v846
      %v851 = vmul.f32 %v345, %v846
      %v852 = vmul.f32 %v346, %v846
      %v853 = vmul.f32 %v347, %v846
      %v854 = vmul.f32 %v348, %v846
      %v855 = vmul.f32 %v349, %v846
      %v856 = vmul.f32 %v350, %v846
      %v857 = vmul.f32 %v351, %v846
      %v858 = vmul.f32 %v352, %v846
      %v859 = vmul.f32 %v353, %v846
      %v860 = vmul.f32 %v354, %v846
      %v861 = vmul.f32 %v355, %v846
      %v862 = vmul.f32 %v356, %v846
      %v863 = vmul.f32 %v357, %v846
      %v864 = vmul.f32 %v358, %v846
      %v865 = vmul.f32 %v359, %v846
      %v866 = vmul.f32 %v360, %v846
      %v867 = vmul.f32 %v361, %v846
      %v868 = vmul.f32 %v362, %v846
      %v869 = vmul.f32 %v363, %v846
      %v870 = vmul.f32 %v364, %v846
      %v871 = vmul.f32 %v365, %v846
      %v872 = vmul.f32 %v366, %v846
      %v873 = vmul.f32 %v367, %v846
      %v874 = vmul.f32 %v368, %v846
      %v875 = vmul.f32 %v369, %v846
      %v876 = vmul.f32 %v370, %v846
      %v877 = vperm.slane %v266, 1
      %v878 = vmul.f32 %v234, %v877
      %v879 = vmul.f32 %v235, %v877
      %v880 = vmul.f32 %v236, %v877
      %v881 = vmul.f32 %v237, %v877
      %v882 = vmul.f32 %v238, %v877
      %v883 = vmul.f32 %v239, %v877
      %v884 = vmul.f32 %v240, %v877
      %v885 = vmul.f32 %v241, %v877
      %v886 = vmul.f32 %v242, %v877
      %v887 = vmul.f32 %v243, %v877
      %v888 = vmul.f32 %v244, %v877
      %v889 = vmul.f32 %v245, %v877
      %v890 = vmul.f32 %v246, %v877
      %v891 = vmul.f32 %v247, %v877
      %v892 = vmul.f32 %v248, %v877
      %v893 = vmul.f32 %v249, %v877
      %v894 = vmul.f32 %v250, %v877
      %v895 = vmul.f32 %v251, %v877
      %v896 = vmul.f32 %v252, %v877
      %v897 = vmul.f32 %v253, %v877
      %v898 = vmul.f32 %v254, %v877
      %v899 = vmul.f32 %v255, %v877
      %v900 = vmul.f32 %v256, %v877
      %v901 = vmul.f32 %v257, %v877
      %v902 = vmul.f32 %v258, %v877
      %v903 = vmul.f32 %v259, %v877
      %v904 = vmul.f32 %v260, %v877
      %v905 = vmul.f32 %v261, %v877
      %v906 = vmul.f32 %v262, %v877
      %v907 = vmul.f32 %v263, %v877
      %v908 = vadd.f32 %v847, %v878
      %v909 = vadd.f32 %v848, %v879
      %v910 = vadd.f32 %v849, %v880
      %v911 = vadd.f32 %v850, %v881
      %v912 = vadd.f32 %v851, %v882
      %v913 = vadd.f32 %v852, %v883
      %v914 = vadd.f32 %v853, %v884
      %v915 = vadd.f32 %v854, %v885
      %v916 = vadd.f32 %v855, %v886
      %v917 = vadd.f32 %v856, %v887
      %v918 = vadd.f32 %v857, %v888
      %v919 = vadd.f32 %v858, %v889
      %v920 = vadd.f32 %v859, %v890
      %v921 = vadd.f32 %v860, %v891
      %v922 = vadd.f32 %v861, %v892
      %v923 = vadd.f32 %v862, %v893
      %v924 = vadd.f32 %v863, %v894
      %v925 = vadd.f32 %v864, %v895
      %v926 = vadd.f32 %v865, %v896
      %v927 = vadd.f32 %v866, %v897
      %v928 = vadd.f32 %v867, %v898
      %v929 = vadd.f32 %v868, %v899
      %v930 = vadd.f32 %v869, %v900
      %v931 = vadd.f32 %v870, %v901
      %v932 = vadd.f32 %v871, %v902
      %v933 = vadd.f32 %v872, %v903
      %v934 = vadd.f32 %v873, %v904
      %v935 = vadd.f32 %v874, %v905
      %v936 = vadd.f32 %v875, %v906
      %v937 = vadd.f32 %v876, %v907
      %v938 = vperm.slane %v266, 2
      %v939 = vmul.f32 %v438, %v938
      %v940 = vmul.f32 %v439, %v938
      %v941 = vmul.f32 %v440, %v938
      %v942 = vmul.f32 %v441, %v938
      %v943 = vmul.f32 %v442, %v938
      %v944 = vmul.f32 %v443, %v938
      %v945 = vmul.f32 %v444, %v938
      %v946 = vmul.f32 %v445, %v938
      %v947 = vmul.f32 %v446, %v938
      %v948 = vmul.f32 %v447, %v938
      %v949 = vmul.f32 %v448, %v938
      %v950 = vmul.f32 %v449, %v938
      %v951 = vmul.f32 %v450, %v938
      %v952 = vmul.f32 %v451, %v938
      %v953 = vmul.f32 %v452, %v938
      %v954 = vmul.f32 %v453, %v938
      %v955 = vmul.f32 %v454, %v938
      %v956 = vmul.f32 %v455, %v938
      %v957 = vmul.f32 %v456, %v938
      %v958 = vmul.f32 %v457, %v938
      %v959 = vmul.f32 %v458, %v938
      %v960 = vmul.f32 %v459, %v938
      %v961 = vmul.f32 %v460, %v938
      %v962 = vmul.f32 %v461, %v938
      %v963 = vmul.f32 %v462, %v938
      %v964 = vmul.f32 %v463, %v938
      %v965 = vmul.f32 %v464, %v938
      %v966 = vmul.f32 %v465, %v938
      %v967 = vmul.f32 %v466, %v938
      %v968 = vmul.f32 %v467, %v938
      %v969 = vadd.f32 %v908, %v939
      %v970 = vadd.f32 %v909, %v940
      %v971 = vadd.f32 %v910, %v941
      %v972 = vadd.f32 %v911, %v942
      %v973 = vadd.f32 %v912, %v943
      %v974 = vadd.f32 %v913, %v944
      %v975 = vadd.f32 %v914, %v945
      %v976 = vadd.f32 %v915, %v946
      %v977 = vadd.f32 %v916, %v947
      %v978 = vadd.f32 %v917, %v948
      %v979 = vadd.f32 %v918, %v949
      %v980 = vadd.f32 %v919, %v950
      %v981 = vadd.f32 %v920, %v951
      %v982 = vadd.f32 %v921, %v952
      %v983 = vadd.f32 %v922, %v953
      %v984 = vadd.f32 %v923, %v954
      %v985 = vadd.f32 %v924, %v955
      %v986 = vadd.f32 %v925, %v956
      %v987 = vadd.f32 %v926, %v957
      %v988 = vadd.f32 %v927, %v958
      %v989 = vadd.f32 %v928, %v959
      %v990 = vadd.f32 %v929, %v960
      %v991 = vadd.f32 %v930, %v961
      %v992 = vadd.f32 %v931, %v962
      %v993 = vadd.f32 %v932, %v963
      %v994 = vadd.f32 %v933, %v964
      %v995 = vadd.f32 %v934, %v965
      %v996 = vadd.f32 %v935, %v966
      %v997 = vadd.f32 %v936, %v967
      %v998 = vadd.f32 %v937, %v968
      %v999 = vadd.f32 %v814, %v969
      %v1000 = vadd.f32 %v815, %v970
      %v1001 = vadd.f32 %v816, %v971
      %v1002 = vadd.f32 %v817, %v972
      %v1003 = vadd.f32 %v818, %v973
      %v1004 = vadd.f32 %v819, %v974
      %v1005 = vadd.f32 %v820, %v975
      %v1006 = vadd.f32 %v821, %v976
      %v1007 = vadd.f32 %v822, %v977
      %v1008 = vadd.f32 %v823, %v978
      %v1009 = vadd.f32 %v824, %v979
      %v1010 = vadd.f32 %v825, %v980
      %v1011 = vadd.f32 %v826, %v981
      %v1012 = vadd.f32 %v827, %v982
      %v1013 = vadd.f32 %v828, %v983
      %v1014 = vadd.f32 %v829, %v984
      %v1015 = vadd.f32 %v830, %v985
      %v1016 = vadd.f32 %v831, %v986
      %v1017 = vadd.f32 %v832, %v987
      %v1018 = vadd.f32 %v833, %v988
      %v1019 = vadd.f32 %v834, %v989
      %v1020 = vadd.f32 %v835, %v990
      %v1021 = vadd.f32 %v836, %v991
      %v1022 = vadd.f32 %v837, %v992
      %v1023 = vadd.f32 %v838, %v993
      %v1024 = vadd.f32 %v839, %v994
      %v1025 = vadd.f32 %v840, %v995
      %v1026 = vadd.f32 %v841, %v996
      %v1027 = vadd.f32 %v842, %v997
      %v1028 = vadd.f32 %v843, %v998
      %v1029 = vadd.f32 %v844, 0.0
      %v1030 = vadd.f32 %v845, 0.0
      %vm1031 = vcmask 31744
      %v1032 = vsel %vm1031, %v999, 0.0
      %v1033 = vsel %vm1031, %v1000, 0.0
      %v1034 = vadd.f32 %v1032, %v1033
      %v1035 = vsel %vm1031, %v1001, 0.0
      %v1036 = vadd.f32 %v1034, %v1035
      %v1037 = vsel %vm1031, %v1002, 0.0
      %v1038 = vadd.f32 %v1036, %v1037
      %v1039 = vsel %vm1031, %v1003, 0.0
      %v1040 = vadd.f32 %v1038, %v1039
      %v1041 = vsel %vm1031, %v1004, 0.0
      %v1042 = vadd.f32 %v1040, %v1041
      %v1043 = vsel %vm1031, %v1005, 0.0
      %v1044 = vadd.f32 %v1042, %v1043
      %v1045 = vsel %vm1031, %v1006, 0.0
      %v1046 = vadd.f32 %v1044, %v1045
      %v1047 = vsel %vm1031, %v1007, 0.0
      %v1048 = vadd.f32 %v1046, %v1047
      %v1049 = vsel %vm1031, %v1008, 0.0
      %v1050 = vadd.f32 %v1048, %v1049
      %v1051 = vsel %vm1031, %v1009, 0.0
      %v1052 = vadd.f32 %v1050, %v1051
      %v1053 = vsel %vm1031, %v1010, 0.0
      %v1054 = vadd.f32 %v1052, %v1053
      %v1055 = vsel %vm1031, %v1011, 0.0
      %v1056 = vadd.f32 %v1054, %v1055
      %v1057 = vsel %vm1031, %v1012, 0.0
      %v1058 = vadd.f32 %v1056, %v1057
      %v1059 = vsel %vm1031, %v1013, 0.0
      %v1060 = vadd.f32 %v1058, %v1059
      %v1061 = vsel %vm1031, %v1014, 0.0
      %v1062 = vadd.f32 %v1060, %v1061
      %v1063 = vsel %vm1031, %v1015, 0.0
      %v1064 = vadd.f32 %v1062, %v1063
      %v1065 = vsel %vm1031, %v1016, 0.0
      %v1066 = vadd.f32 %v1064, %v1065
      %v1067 = vsel %vm1031, %v1017, 0.0
      %v1068 = vadd.f32 %v1066, %v1067
      %v1069 = vsel %vm1031, %v1018, 0.0
      %v1070 = vadd.f32 %v1068, %v1069
      %v1071 = vsel %vm1031, %v1019, 0.0
      %v1072 = vadd.f32 %v1070, %v1071
      %v1073 = vsel %vm1031, %v1020, 0.0
      %v1074 = vadd.f32 %v1072, %v1073
      %v1075 = vsel %vm1031, %v1021, 0.0
      %v1076 = vadd.f32 %v1074, %v1075
      %v1077 = vsel %vm1031, %v1022, 0.0
      %v1078 = vadd.f32 %v1076, %v1077
      %v1079 = vsel %vm1031, %v1023, 0.0
      %v1080 = vadd.f32 %v1078, %v1079
      %v1081 = vsel %vm1031, %v1024, 0.0
      %v1082 = vadd.f32 %v1080, %v1081
      %v1083 = vsel %vm1031, %v1025, 0.0
      %v1084 = vadd.f32 %v1082, %v1083
      %v1085 = vsel %vm1031, %v1026, 0.0
      %v1086 = vadd.f32 %v1084, %v1085
      %v1087 = vsel %vm1031, %v1027, 0.0
      %v1088 = vadd.f32 %v1086, %v1087
      %v1089 = vsel %vm1031, %v1028, 0.0
      %v1090 = vadd.f32 %v1088, %v1089
      %v1091 = vsel %vm1031, %v1029, 0.0
      %v1092 = vadd.f32 %v1090, %v1091
      %v1093 = vsel %vm1031, %v1030, 0.0
      %v1094 = vadd.f32 %v1092, %v1093
      %v1095 = vrot.slane %v1094, 4
      %v1096 = vadd.f32 %v1094, %v1095
      %v1097 = vrot.slane %v1096, 2
      %v1098 = vadd.f32 %v1096, %v1097
      %v1099 = vrot.slane %v1098, 1
      %v1100 = vadd.f32 %v1098, %v1099
      %v1101 = vmul.f32 %v1100, 0.00390625
      %v1102 = vsub.f32 %v999, %v1101
      %v1103 = vsub.f32 %v1000, %v1101
      %v1104 = vsub.f32 %v1001, %v1101
      %v1105 = vsub.f32 %v1002, %v1101
      %v1106 = vsub.f32 %v1003, %v1101
      %v1107 = vsub.f32 %v1004, %v1101
      %v1108 = vsub.f32 %v1005, %v1101
      %v1109 = vsub.f32 %v1006, %v1101
      %v1110 = vsub.f32 %v1007, %v1101
      %v1111 = vsub.f32 %v1008, %v1101
      %v1112 = vsub.f32 %v1009, %v1101
      %v1113 = vsub.f32 %v1010, %v1101
      %v1114 = vsub.f32 %v1011, %v1101
      %v1115 = vsub.f32 %v1012, %v1101
      %v1116 = vsub.f32 %v1013, %v1101
      %v1117 = vsub.f32 %v1014, %v1101
      %v1118 = vsub.f32 %v1015, %v1101
      %v1119 = vsub.f32 %v1016, %v1101
      %v1120 = vsub.f32 %v1017, %v1101
      %v1121 = vsub.f32 %v1018, %v1101
      %v1122 = vsub.f32 %v1019, %v1101
      %v1123 = vsub.f32 %v1020, %v1101
      %v1124 = vsub.f32 %v1021, %v1101
      %v1125 = vsub.f32 %v1022, %v1101
      %v1126 = vsub.f32 %v1023, %v1101
      %v1127 = vsub.f32 %v1024, %v1101
      %v1128 = vsub.f32 %v1025, %v1101
      %v1129 = vsub.f32 %v1026, %v1101
      %v1130 = vsub.f32 %v1027, %v1101
      %v1131 = vsub.f32 %v1028, %v1101
      %v1132 = vsub.f32 %v1029, %v1101
      %v1133 = vsub.f32 %v1030, %v1101
      %v1134 = vmul.f32 %v1102, %v1102
      %v1135 = vmul.f32 %v1103, %v1103
      %v1136 = vmul.f32 %v1104, %v1104
      %v1137 = vmul.f32 %v1105, %v1105
      %v1138 = vmul.f32 %v1106, %v1106
      %v1139 = vmul.f32 %v1107, %v1107
      %v1140 = vmul.f32 %v1108, %v1108
      %v1141 = vmul.f32 %v1109, %v1109
      %v1142 = vmul.f32 %v1110, %v1110
      %v1143 = vmul.f32 %v1111, %v1111
      %v1144 = vmul.f32 %v1112, %v1112
      %v1145 = vmul.f32 %v1113, %v1113
      %v1146 = vmul.f32 %v1114, %v1114
      %v1147 = vmul.f32 %v1115, %v1115
      %v1148 = vmul.f32 %v1116, %v1116
      %v1149 = vmul.f32 %v1117, %v1117
      %v1150 = vmul.f32 %v1118, %v1118
      %v1151 = vmul.f32 %v1119, %v1119
      %v1152 = vmul.f32 %v1120, %v1120
      %v1153 = vmul.f32 %v1121, %v1121
      %v1154 = vmul.f32 %v1122, %v1122
      %v1155 = vmul.f32 %v1123, %v1123
      %v1156 = vmul.f32 %v1124, %v1124
      %v1157 = vmul.f32 %v1125, %v1125
      %v1158 = vmul.f32 %v1126, %v1126
      %v1159 = vmul.f32 %v1127, %v1127
      %v1160 = vmul.f32 %v1128, %v1128
      %v1161 = vmul.f32 %v1129, %v1129
      %v1162 = vmul.f32 %v1130, %v1130
      %v1163 = vmul.f32 %v1131, %v1131
      %v1164 = vmul.f32 %v1132, %v1132
      %v1165 = vmul.f32 %v1133, %v1133
      %v1166 = vsel %vm1031, %v1134, 0.0
      %v1167 = vsel %vm1031, %v1135, 0.0
      %v1168 = vadd.f32 %v1166, %v1167
      %v1169 = vsel %vm1031, %v1136, 0.0
      %v1170 = vadd.f32 %v1168, %v1169
      %v1171 = vsel %vm1031, %v1137, 0.0
      %v1172 = vadd.f32 %v1170, %v1171
      %v1173 = vsel %vm1031, %v1138, 0.0
      %v1174 = vadd.f32 %v1172, %v1173
      %v1175 = vsel %vm1031, %v1139, 0.0
      %v1176 = vadd.f32 %v1174, %v1175
      %v1177 = vsel %vm1031, %v1140, 0.0
      %v1178 = vadd.f32 %v1176, %v1177
      %v1179 = vsel %vm1031, %v1141, 0.0
      %v1180 = vadd.f32 %v1178, %v1179
      %v1181 = vsel %vm1031, %v1142, 0.0
      %v1182 = vadd.f32 %v1180, %v1181
      %v1183 = vsel %vm1031, %v1143, 0.0
      %v1184 = vadd.f32 %v1182, %v1183
      %v1185 = vsel %vm1031, %v1144, 0.0
      %v1186 = vadd.f32 %v1184, %v1185
      %v1187 = vsel %vm1031, %v1145, 0.0
      %v1188 = vadd.f32 %v1186, %v1187
      %v1189 = vsel %vm1031, %v1146, 0.0
      %v1190 = vadd.f32 %v1188, %v1189
      %v1191 = vsel %vm1031, %v1147, 0.0
      %v1192 = vadd.f32 %v1190, %v1191
      %v1193 = vsel %vm1031, %v1148, 0.0
      %v1194 = vadd.f32 %v1192, %v1193
      %v1195 = vsel %vm1031, %v1149, 0.0
      %v1196 = vadd.f32 %v1194, %v1195
      %v1197 = vsel %vm1031, %v1150, 0.0
      %v1198 = vadd.f32 %v1196, %v1197
      %v1199 = vsel %vm1031, %v1151, 0.0
      %v1200 = vadd.f32 %v1198, %v1199
      %v1201 = vsel %vm1031, %v1152, 0.0
      %v1202 = vadd.f32 %v1200, %v1201
      %v1203 = vsel %vm1031, %v1153, 0.0
      %v1204 = vadd.f32 %v1202, %v1203
      %v1205 = vsel %vm1031, %v1154, 0.0
      %v1206 = vadd.f32 %v1204, %v1205
      %v1207 = vsel %vm1031, %v1155, 0.0
      %v1208 = vadd.f32 %v1206, %v1207
      %v1209 = vsel %vm1031, %v1156, 0.0
      %v1210 = vadd.f32 %v1208, %v1209
      %v1211 = vsel %vm1031, %v1157, 0.0
      %v1212 = vadd.f32 %v1210, %v1211
      %v1213 = vsel %vm1031, %v1158, 0.0
      %v1214 = vadd.f32 %v1212, %v1213
      %v1215 = vsel %vm1031, %v1159, 0.0
      %v1216 = vadd.f32 %v1214, %v1215
      %v1217 = vsel %vm1031, %v1160, 0.0
      %v1218 = vadd.f32 %v1216, %v1217
      %v1219 = vsel %vm1031, %v1161, 0.0
      %v1220 = vadd.f32 %v1218, %v1219
      %v1221 = vsel %vm1031, %v1162, 0.0
      %v1222 = vadd.f32 %v1220, %v1221
      %v1223 = vsel %vm1031, %v1163, 0.0
      %v1224 = vadd.f32 %v1222, %v1223
      %v1225 = vsel %vm1031, %v1164, 0.0
      %v1226 = vadd.f32 %v1224, %v1225
      %v1227 = vsel %vm1031, %v1165, 0.0
      %v1228 = vadd.f32 %v1226, %v1227
      %v1229 = vrot.slane %v1228, 4
      %v1230 = vadd.f32 %v1228, %v1229
      %v1231 = vrot.slane %v1230, 2
      %v1232 = vadd.f32 %v1230, %v1231
      %v1233 = vrot.slane %v1232, 1
      %v1234 = vadd.f32 %v1232, %v1233
      %vm1235 = vcmask 24576
      %1236 = vst.msk [vmem:[%s225] sm:$0x1] %vm1235, %v1101
      %1237 = vst.msk [vmem:[%s231] sm:$0x1] %vm1235, %v1234
      %p1238 = scmp.lt.s32.totalorder %s20, 1
      %s1239 = scalar_select %p1238, %s20, 1
      %p1240 = scmp.lt.s32.totalorder %s19, 0
      %s1241 = scalar_select %p1240, %s19, 0
      %s1242 = sadd.s32 %s1241, %s1239
      %s1243 = scalar_lea.vmem %s2, %s1242
      %p1244 = scmp.lt.s32.totalorder %s20, 1
      %s1245 = scalar_select %p1244, %s20, 1
      %p1246 = scmp.lt.s32.totalorder %s19, 0
      %s1247 = scalar_select %p1246, %s19, 0
      %s1248 = sadd.s32 %s1247, %s1245
      %s1249 = scalar_lea.vmem %s3, %s1248
      // Predicated region
      $region29: #{depthwise_conv_block.2} parent=27 // pred_check
        %p1250 = pneg %p101
      $region30: #{depthwise_conv_block.2} parent=27 // pred_check_branch
        %1252 = sbr.rel (%p1250) target = $region32
      $region31: #{depthwise_conv_block.2} parent=27 // pred_region
        _
      $region32: #{depthwise_conv_block.2} parent=27 // pred_fallthru
        _
      // Predicated region
      $region33: #{depthwise_conv_block.2} parent=27 // pred_check
        %p1253 = pneg %p129
      $region34: #{depthwise_conv_block.2} parent=27 // pred_check_branch
        %1255 = sbr.rel (%p1253) target = $region36
      $region35: #{depthwise_conv_block.2} parent=27 // pred_region
        _
      $region36: #{depthwise_conv_block.2} parent=27 // pred_fallthru
        _
    $region28: #{depthwise_conv_block.2} parent=5 // pred_fallthru
      _
    %p1256 = scmp.le.s32.totalorder 2, %s10
    // Predicated region
    $region37: #{depthwise_conv_block.2} parent=5 // pred_check
      %p1257 = pneg %p1256
    $region38: #{depthwise_conv_block.2} parent=5 // pred_check_branch
      %1259 = sbr.rel (%p1257) target = $region40
    $region39: #{depthwise_conv_block.2} parent=5 // pred_region
      %s1260 = ssub.s32 %s10, 2
      // Predicated region
      $region41: #{depthwise_conv_block.2} parent=39 // pred_check
        %p1261 = pneg %p107
      $region42: #{depthwise_conv_block.2} parent=39 // pred_check_branch
        %1263 = sbr.rel (%p1261) target = $region44
      $region43: #{depthwise_conv_block.2} parent=39 // pred_region
        %p1264 = scmp.lt.s32.totalorder %s22, 1
        %s1265 = scalar_select %p1264, %s22, 1
        %p1266 = scmp.lt.s32.totalorder %s21, 0
        %s1267 = scalar_select %p1266, %s21, 0
        %s1268 = sadd.s32 %s1267, %s1265
        %s1269 = scalar_lea.vmem %s2, %s1268
      $region44: #{depthwise_conv_block.2} parent=39 // pred_fallthru
        _
      // Predicated region
      $region45: #{depthwise_conv_block.2} parent=39 // pred_check
        %p1270 = pneg %p135
      $region46: #{depthwise_conv_block.2} parent=39 // pred_check_branch
        %1272 = sbr.rel (%p1270) target = $region48
      $region47: #{depthwise_conv_block.2} parent=39 // pred_region
        %p1273 = scmp.lt.s32.totalorder %s22, 1
        %s1274 = scalar_select %p1273, %s22, 1
        %p1275 = scmp.lt.s32.totalorder %s21, 0
        %s1276 = scalar_select %p1275, %s21, 0
        %s1277 = sadd.s32 %s1276, %s1274
        %s1278 = scalar_lea.vmem %s3, %s1277
      $region48: #{depthwise_conv_block.2} parent=39 // pred_fallthru
        _
    $region40: #{depthwise_conv_block.2} parent=5 // pred_fallthru
      _
  $region6: #{depthwise_conv_block.2} parent=0 // loop_footer
    %s14 = sadd.s32 1, %s10
  $region7: #{depthwise_conv_block.2} parent=0 // loop_footer_branch
    %9 = sbr.rel target = $region3
  $region8: #{depthwise_conv_block.2} parent=0 // loop_exit
    _

// kernel: depthwise_conv_block.3
$region0: #{depthwise_conv_block.3}
  #allocation0 [shape = 'u32[]', space=smem, size = 0x4, offset = 0x4, fixed_abs, tag = 'smem constant byte address 0x4 - core index']
  #allocation1 [shape = 'u32[72,128]{1,0:T(1,128)}', space=vmem, size = 0x9000, scoped, tag = 'internal scratch']
  %s0 = inlined_call_operand.vmem [shape: f32[2,16,16,4], index: 0, kind: input, shape index: {}]
  %s1 = inlined_call_operand.vmem [shape: f32[3,3,4], index: 1, kind: input, shape index: {}]
  %s2 = inlined_call_operand.vmem [shape: f32[1,1,4], index: 2, kind: input, shape index: {}]
  %s3 = inlined_call_operand.vmem [shape: f32[2,16,16,4], index: 3, kind: output, shape index: {}]
  %s4 = sld [smem:[#allocation0]]
  $region45: #{depthwise_conv_block.3} parent=0
    _
  %s6 = ssub.s32 1, %s4
  %s7 = scalar_select 0, %s6, %s4
  loop: start=0, step=1, limit=4
  $region2: #{depthwise_conv_block.3} parent=0 // loop_pre_header
    _
  $region3: #{depthwise_conv_block.3} parent=0 // loop_header
    %s9 = sphi 0, %s13
    %p10 = scmp.ge.s32.totalorder %s9, 4
    %s16 = sphi 0, %s28
    %s17 = sphi 0, %s24
    %s18 = sphi 0, %s16
    %s19 = sphi 0, %s17
    %s20 = sphi 0, %s18
    %s21 = sphi 0, %s19
    %s33 = sphi 0, %s35
    %s36 = sphi 0, %s33
    %s37 = sphi 0, %s36
    %s53 = sphi 0, %s37
    %s59 = sphi 0, %s61
    %s62 = sphi 0, %s59
    %s63 = sphi 0, %s62
    %s79 = sphi 0, %s63
    %s85 = sphi 0, %s87
    %s88 = sphi 0, %s85
    %s89 = sphi 0, %s88
    %s105 = sphi 0, %s89
    %s113 = sphi 0, %s115
    %s116 = sphi 0, %s113
    %s117 = sphi 0, %s116
    %s133 = sphi 0, %s117
  $region4: #{depthwise_conv_block.3} parent=0 // loop_header_branch
    %12 = sbr.rel (%p10) target = $region8
  $region5: #{depthwise_conv_block.3} parent=0 // loop_body
    %s14 = ssub.s32 %s9, 1
    %s15 = ssub.s32 %s9, 2
    %s22 = sadd.s32 1, %s17
    %p23 = scmp.ge.s32.totalorder %s22, 2
    %s24 = scalar_select %p23, 0, %s22
    %s25 = sadd.s32 1, %s16
    %s26 = scalar_select %p23, %s25, %s16
    %p27 = scmp.ge.s32.totalorder %s26, 1
    %s28 = scalar_select %p27, 0, %s26
    %s29 = ssub.s32 %s17, %s24
    %s30 = ssub.s32 %s16, %s28
    %s31 = sor.u32 %s29, %s30
    %p32 = scmp.eq.s32.totalorder %s31, 0
    %s34 = sadd.s32 %s33, 1
    %s35 = scalar_select %p32, %s33, %s34
    %p38 = pneg %p32
    %p39 = scmp.eq.s32.totalorder %s9, 1
    %p40 = por %p38, %p39
    %p41 = scmp.ne.s32.totalorder %s33, %s36
    %p42 = scmp.eq.s32.totalorder %s9, 0
    %p43 = por %p41, %p42
    %p44 = scmp.ne.s32.totalorder %s33, %s36
    %p45 = scmp.eq.s32.totalorder %s14, 1
    %p46 = por %p44, %p45
    %p47 = scmp.ne.s32.totalorder %s36, %s37
    %p48 = scmp.eq.s32.totalorder %s14, 0
    %p49 = por %p47, %p48
    %p50 = scmp.ne.s32.totalorder %s36, %s37
    %p51 = scmp.eq.s32.totalorder %s15, 1
    %p52 = por %p50, %p51
    %p54 = scmp.ne.s32.totalorder %s37, %s53
    %p55 = scmp.eq.s32.totalorder %s15, 0
    %p56 = por %p54, %p55
    %s57 = ssub.s32 %s16, %s28
    %p58 = scmp.eq.s32.totalorder %s57, 0
    %s60 = sadd.s32 %s59, 1
    %s61 = scalar_select %p58, %s59, %s60
    %p64 = pneg %p58
    %p65 = scmp.eq.s32.totalorder %s9, 1
    %p66 = por %p64, %p65
    %p67 = scmp.ne.s32.totalorder %s59, %s62
    %p68 = scmp.eq.s32.totalorder %s9, 0
    %p69 = por %p67, %p68
    %p70 = scmp.ne.s32.totalorder %s59, %s62
    %p71 = scmp.eq.s32.totalorder %s14, 1
    %p72 = por %p70, %p71
    %p73 = scmp.ne.s32.totalorder %s62, %s63
    %p74 = scmp.eq.s32.totalorder %s14, 0
    %p75 = por %p73, %p74
    %p76 = scmp.ne.s32.totalorder %s62, %s63
    %p77 = scmp.eq.s32.totalorder %s15, 1
    %p78 = por %p76, %p77
    %p80 = scmp.ne.s32.totalorder %s63, %s79
    %p81 = scmp.eq.s32.totalorder %s15, 0
    %p82 = por %p80, %p81
    %s83 = ssub.s32 %s16, %s28
    %p84 = scmp.eq.s32.totalorder %s83, 0
    %s86 = sadd.s32 %s85, 1
    %s87 = scalar_select %p84, %s85, %s86
    %p90 = pneg %p84
    %p91 = scmp.eq.s32.totalorder %s9, 1
    %p92 = por %p90, %p91
    %p93 = scmp.ne.s32.totalorder %s85, %s88
    %p94 = scmp.eq.s32.totalorder %s9, 0
    %p95 = por %p93, %p94
    %p96 = scmp.ne.s32.totalorder %s85, %s88
    %p97 = scmp.eq.s32.totalorder %s14, 1
    %p98 = por %p96, %p97
    %p99 = scmp.ne.s32.totalorder %s88, %s89
    %p100 = scmp.eq.s32.totalorder %s14, 0
    %p101 = por %p99, %p100
    %p102 = scmp.ne.s32.totalorder %s88, %s89
    %p103 = scmp.eq.s32.totalorder %s15, 1
    %p104 = por %p102, %p103
    %p106 = scmp.ne.s32.totalorder %s89, %s105
    %p107 = scmp.eq.s32.totalorder %s15, 0
    %p108 = por %p106, %p107
    %s109 = ssub.s32 %s17, %s24
    %s110 = ssub.s32 %s16, %s28
    %s111 = sor.u32 %s109, %s110
    %p112 = scmp.eq.s32.totalorder %s111, 0
    %s114 = sadd.s32 %s113, 1
    %s115 = scalar_select %p112, %s113, %s114
    %p118 = pneg %p112
    %p119 = scmp.eq.s32.totalorder %s9, 1
    %p120 = por %p118, %p119
    %p121 = scmp.ne.s32.totalorder %s113, %s116
    %p122 = scmp.eq.s32.totalorder %s9, 0
    %p123 = por %p121, %p122
    %p124 = scmp.ne.s32.totalorder %s113, %s116
    %p125 = scmp.eq.s32.totalorder %s14, 1
    %p126 = por %p124, %p125
    %p127 = scmp.ne.s32.totalorder %s116, %s117
    %p128 = scmp.eq.s32.totalorder %s14, 0
    %p129 = por %p127, %p128
    %p130 = scmp.ne.s32.totalorder %s116, %s117
    %p131 = scmp.eq.s32.totalorder %s15, 1
    %p132 = por %p130, %p131
    %p134 = scmp.ne.s32.totalorder %s117, %s133
    %p135 = scmp.eq.s32.totalorder %s15, 0
    %p136 = por %p134, %p135
    %p137 = scmp.le.s32.totalorder 1, %s9
    %p138 = scmp.lt.s32.totalorder %s9, 3
    %p139 = pnand %p137, %p138
    %p140 = pneg %p139
    // Predicated region
    $region9: #{depthwise_conv_block.3} parent=5 // pred_check
      _
    $region10: #{depthwise_conv_block.3} parent=5 // pred_check_branch
      %142 = sbr.rel (%p139) target = $region12
    $region11: #{depthwise_conv_block.3} parent=5 // pred_region
      %s143 = ssub.s32 %s9, 1
      // Predicated region
      $region13: #{depthwise_conv_block.3} parent=11 // pred_check
        %p144 = pneg %p75
      $region14: #{depthwise_conv_block.3} parent=11 // pred_check_branch
        %146 = sbr.rel (%p144) target = $region16
      $region15: #{depthwise_conv_block.3} parent=11 // pred_region
        %p147 = scmp.lt.s32.totalorder %s18, 0
        %s148 = scalar_select %p147, %s18, 0
        %s149 = smul.addr %s148, 4
        %s150 = scalar_lea.vmem %s1, %s149
      $region16: #{depthwise_conv_block.3} parent=11 // pred_fallthru
        _
      // Predicated region
      $region17: #{depthwise_conv_block.3} parent=11 // pred_check
        %p151 = pneg %p101
      $region18: #{depthwise_conv_block.3} parent=11 // pred_check_branch
        %153 = sbr.rel (%p151) target = $region20
      $region19: #{depthwise_conv_block.3} parent=11 // pred_region
        %p154 = scmp.lt.s32.totalorder %s18, 0
        %s155 = scalar_select %p154, %s18, 0
        %s156 = scalar_lea.vmem %s2, %s155
      $region20: #{depthwise_conv_block.3} parent=11 // pred_fallthru
        _
    $region12: #{depthwise_conv_block.3} parent=5 // pred_fallthru
      _
    %p157 = scmp.lt.s32.totalorder %s9, 2
    // Predicated region
    $region21: #{depthwise_conv_block.3} parent=5 // pred_check
      %p158 = pneg %p157
    $region22: #{depthwise_conv_block.3} parent=5 // pred_check_branch
      %160 = sbr.rel (%p158) target = $region24
    $region23: #{depthwise_conv_block.3} parent=5 // pred_region
      // Predicated region
      $region25: #{depthwise_conv_block.3} parent=23 // pred_check
        %p161 = pneg %p43
      $region26: #{depthwise_conv_block.3} parent=23 // pred_check_branch
        %163 = sbr.rel (%p161) target = $region28
      $region27: #{depthwise_conv_block.3} parent=23 // pred_region
        %p164 = scmp.lt.s32.totalorder %s17, 1
        %s165 = scalar_select %p164, %s17, 1
        %p166 = scmp.lt.s32.totalorder %s16, 0
        %s167 = scalar_select %p166, %s16, 0
        %s168 = smul.addr %s165, 32
        %s169 = sadd.s32 %s167, %s168
        %s170 = smul.addr %s169, 8
        %s171 = scalar_lea.vmem %s0, %s170
      $region28: #{depthwise_conv_block.3} parent=23 // pred_fallthru
        _
    $region24: #{depthwise_conv_block.3} parent=5 // pred_fallthru
      _
    %p172 = scmp.le.s32.totalorder 1, %s9
    %p173 = scmp.lt.s32.totalorder %s9, 3
    %p174 = pnand %p172, %p173
    %p175 = pneg %p174
    // Predicated region
    $region29: #{depthwise_conv_block.3} parent=5 // pred_check
      _
    $region30: #{depthwise_conv_block.3} parent=5 // pred_check_branch
      %177 = sbr.rel (%p174) target = $region32
    $region31: #{depthwise_conv_block.3} parent=5 // pred_region
      %s178 = ssub.s32 %s9, 1
      %p179 = scmp.lt.s32.totalorder %s19, 1
      %s180 = scalar_select %p179, %s19, 1
      %p181 = scmp.lt.s32.totalorder %s18, 0
      %s182 = scalar_select %p181, %s18, 0
      %s183 = smul.addr %s180, 32
      %s184 = sadd.s32 %s182, %s183
      %s185 = smul.addr %s184, 8
      %s186 = scalar_lea.vmem %s0, %s185
      %p187 = pneg %p49
      %p188 = pneg %p46
      %p189 = scmp.lt.s32.totalorder %s18, 0
      %s190 = scalar_select %p189, %s18, 0
      %s191 = smul.addr %s190, 4
      %s192 = scalar_lea.vmem %s1, %s191
      %p193 = pneg %p75
      %p194 = pneg %p72
      %p195 = scmp.lt.s32.totalorder %s18, 0
      %s196 = scalar_select %p195, %s18, 0
      %s197 = scalar_lea.vmem %s2, %s196
      %p198 = pneg %p101
      %p199 = pneg %p98
      %p200 = pneg %p129
      %p201 = pneg %p126
      %p202 = scmp.lt.s32.totalorder %s19, 1
      %s203 = scalar_select %p202, %s19, 1
      %p204 = scmp.lt.s32.totalorder %s18, 0
      %s205 = scalar_select %p204, %s18, 0
      %s206 = smul.addr %s203, 32
      %s207 = sadd.s32 %s205, %s206
      %s208 = smul.addr %s207, 8
      %s209 = scalar_lea.vmem %s3, %s208
      %p210 = scmp.lt.s32.totalorder %s19, 1
      %s211 = scalar_select %p210, %s19, 1
      %p212 = scmp.lt.s32.totalorder %s18, 0
      %s213 = scalar_select %p212, %s18, 0
      %s214 = smul.addr %s211, 32
      %s215 = sadd.s32 %s213, %s214
      %s216 = smul.addr %s215, 8
      %s217 = scalar_lea.vmem %s0, %s216
      %p218 = scmp.lt.s32.totalorder %s18, 0
      %s219 = scalar_select %p218, %s18, 0
      %s220 = smul.addr %s219, 4
      %s221 = scalar_lea.vmem %s1, %s220
      %p222 = scmp.lt.s32.totalorder %s18, 0
      %s223 = scalar_select %p222, %s18, 0
      %s224 = scalar_lea.vmem %s2, %s223
      %p225 = scmp.lt.s32.totalorder %s19, 1
      %s226 = scalar_select %p225, %s19, 1
      %p227 = scmp.lt.s32.totalorder %s18, 0
      %s228 = scalar_select %p227, %s18, 0
      %s229 = smul.addr %s226, 32
      %s230 = sadd.s32 %s228, %s229
      %s231 = smul.addr %s230, 8
      %s232 = scalar_lea.vmem %s3, %s231
      %v233 = vld [vmem:[%s217] sm:$0xff]
      %v234 = vld [vmem:[%s217 + $0x8] sm:$0xff]
      %v235 = vld [vmem:[%s217 + $0x10] sm:$0xff]
      %v236 = vld [vmem:[%s217 + $0x18] sm:$0xff]
      %v237 = vld [vmem:[%s217 + $0x20] sm:$0xff]
      %v238 = vld [vmem:[%s217 + $0x28] sm:$0xff]
      %v239 = vld [vmem:[%s217 + $0x30] sm:$0xff]
      %v240 = vld [vmem:[%s217 + $0x38] sm:$0xff]
      %v241 = vld [vmem:[%s217 + $0x40] sm:$0xff]
      %v242 = vld [vmem:[%s217 + $0x48] sm:$0xff]
      %v243 = vld [vmem:[%s217 + $0x50] sm:$0xff]
      %v244 = vld [vmem:[%s217 + $0x58] sm:$0xff]
      %v245 = vld [vmem:[%s217 + $0x60] sm:$0xff]
      %v246 = vld [vmem:[%s217 + $0x68] sm:$0xff]
      %v247 = vld [vmem:[%s217 + $0x70] sm:$0xff]
      %v248 = vld [vmem:[%s217 + $0x78] sm:$0xff]
      %v249 = vld [vmem:[%s217 + $0x80] sm:$0xff]
      %v250 = vld [vmem:[%s217 + $0x88] sm:$0xff]
      %v251 = vld [vmem:[%s217 + $0x90] sm:$0xff]
      %v252 = vld [vmem:[%s217 + $0x98] sm:$0xff]
      %v253 = vld [vmem:[%s217 + $0xa0] sm:$0xff]
      %v254 = vld [vmem:[%s217 + $0xa8] sm:$0xff]
      %v255 = vld [vmem:[%s217 + $0xb0] sm:$0xff]
      %v256 = vld [vmem:[%s217 + $0xb8] sm:$0xff]
      %v257 = vld [vmem:[%s217 + $0xc0] sm:$0xff]
      %v258 = vld [vmem:[%s217 + $0xc8] sm:$0xff]
      %v259 = vld [vmem:[%s217 + $0xd0] sm:$0xff]
      %v260 = vld [vmem:[%s217 + $0xd8] sm:$0xff]
      %v261 = vld [vmem:[%s217 + $0xe0] sm:$0xff]
      %v262 = vld [vmem:[%s217 + $0xe8] sm:$0xff]
      %v263 = vld [vmem:[%s217 + $0xf0] sm:$0xff]
      %v264 = vld [vmem:[%s217 + $0xf8] sm:$0xff]
      %v265 = vld [vmem:[%s221] sm:$0x7]
      %v266 = vld [vmem:[%s221 + $0x4] sm:$0x7]
      %v267 = vld [vmem:[%s221 + $0x8] sm:$0x7]
      %v268 = vlaneseq
      %v269 = vshrl.u32 %v268, 7
      %v270 = vadd.s32 %v269, 8
      %vm271 = vcmp.ge.s32.totalorder %v269, 1
      %vm272 = vcmp.ge.s32.totalorder %v270, 1
      %vm273 = vcmp.lt.s32.totalorder %v269, 15
      %vm274 = vcmp.lt.s32.totalorder %v270, 15
      %v275 = vrot.slane %v233, 7
      %v276 = vrot.slane %v235, 7
      %v277 = vrot.slane %v237, 7
      %v278 = vrot.slane %v239, 7
      %v279 = vrot.slane %v241, 7
      %v280 = vrot.slane %v243, 7
      %v281 = vrot.slane %v245, 7
      %v282 = vrot.slane %v247, 7
      %v283 = vrot.slane %v249, 7
      %v284 = vrot.slane %v251, 7
      %v285 = vrot.slane %v253, 7
      %v286 = vrot.slane %v255, 7
      %v287 = vrot.slane %v257, 7
      %v288 = vrot.slane %v259, 7
      %v289 = vrot.slane %v261, 7
      %v290 = vrot.slane %v263, 7
      %v291 = vrot.slane %v234, 7
      %v292 = vrot.slane %v236, 7
      %v293 = vrot.slane %v238, 7
      %v294 = vrot.slane %v240, 7
      %v295 = vrot.slane %v242, 7
      %v296 = vrot.slane %v244, 7
      %v297 = vrot.slane %v246, 7
      %v298 = vrot.slane %v248, 7
      %v299 = vrot.slane %v250, 7
      %v300 = vrot.slane %v252, 7
      %v301 = vrot.slane %v254, 7
      %v302 = vrot.slane %v256, 7
      %v303 = vrot.slane %v258, 7
      %v304 = vrot.slane %v260, 7
      %v305 = vrot.slane %v262, 7
      %v306 = vrot.slane %v264, 7
      %vm307 = vcmp.lt.s32.totalorder %v269, 1
      %v308 = vsel %vm307, %v275, %v291
      %v309 = vsel %vm307, %v276, %v292
      %v310 = vsel %vm307, %v277, %v293
      %v311 = vsel %vm307, %v278, %v294
      %v312 = vsel %vm307, %v279, %v295
      %v313 = vsel %vm307, %v280, %v296
      %v314 = vsel %vm307, %v281, %v297
      %v315 = vsel %vm307, %v282, %v298
      %v316 = vsel %vm307, %v283, %v299
      %v317 = vsel %vm307, %v284, %v300
      %v318 = vsel %vm307, %v285, %v301
      %v319 = vsel %vm307, %v286, %v302
      %v320 = vsel %vm307, %v287, %v303
      %v321 = vsel %vm307, %v288, %v304
      %v322 = vsel %vm307, %v289, %v305
      %v323 = vsel %vm307, %v290, %v306
      %v324 = vsel %vm307, %v291, %v275
      %v325 = vsel %vm307, %v292, %v276
      %v326 = vsel %vm307, %v293, %v277
      %v327 = vsel %vm307, %v294, %v278
      %v328 = vsel %vm307, %v295, %v279
      %v329 = vsel %vm307, %v296, %v280
      %v330 = vsel %vm307, %v297, %v281
      %v331 = vsel %vm307, %v298, %v282
      %v332 = vsel %vm307, %v299, %v283
      %v333 = vsel %vm307, %v300, %v284
      %v334 = vsel %vm307, %v301, %v285
      %v335 = vsel %vm307, %v302, %v286
      %v336 = vsel %vm307, %v303, %v287
      %v337 = vsel %vm307, %v304, %v288
      %v338 = vsel %vm307, %v305, %v289
      %v339 = vsel %vm307, %v306, %v290
      %v340 = vsel %vm271, %v324, 0.0
      %v341 = vsel %vm272, %v308, 0.0
      %v342 = vsel %vm271, %v325, 0.0
      %v343 = vsel %vm272, %v309, 0.0
      %v344 = vsel %vm271, %v326, 0.0
      %v345 = vsel %vm272, %v310, 0.0
      %v346 = vsel %vm271, %v327, 0.0
      %v347 = vsel %vm272, %v311, 0.0
      %v348 = vsel %vm271, %v328, 0.0
      %v349 = vsel %vm272, %v312, 0.0
      %v350 = vsel %vm271, %v329, 0.0
      %v351 = vsel %vm272, %v313, 0.0
      %v352 = vsel %vm271, %v330, 0.0
      %v353 = vsel %vm272, %v314, 0.0
      %v354 = vsel %vm271, %v331, 0.0
      %v355 = vsel %vm272, %v315, 0.0
      %v356 = vsel %vm271, %v332, 0.0
      %v357 = vsel %vm272, %v316, 0.0
      %v358 = vsel %vm271, %v333, 0.0
      %v359 = vsel %vm272, %v317, 0.0
      %v360 = vsel %vm271, %v334, 0.0
      %v361 = vsel %vm272, %v318, 0.0
      %v362 = vsel %vm271, %v335, 0.0
      %v363 = vsel %vm272, %v319, 0.0
      %v364 = vsel %vm271, %v336, 0.0
      %v365 = vsel %vm272, %v320, 0.0
      %v366 = vsel %vm271, %v337, 0.0
      %v367 = vsel %vm272, %v321, 0.0
      %v368 = vsel %vm271, %v338, 0.0
      %v369 = vsel %vm272, %v322, 0.0
      %v370 = vsel %vm271, %v339, 0.0
      %v371 = vsel %vm272, %v323, 0.0
      %v372 = vrot.slane %v233, 1
      %v373 = vrot.slane %v235, 1
      %v374 = vrot.slane %v237, 1
      %v375 = vrot.slane %v239, 1
      %v376 = vrot.slane %v241, 1
      %v377 = vrot.slane %v243, 1
      %v378 = vrot.slane %v245, 1
      %v379 = vrot.slane %v247, 1
      %v380 = vrot.slane %v249, 1
      %v381 = vrot.slane %v251, 1
      %v382 = vrot.slane %v253, 1
      %v383 = vrot.slane %v255, 1
      %v384 = vrot.slane %v257, 1
      %v385 = vrot.slane %v259, 1
      %v386 = vrot.slane %v261, 1
      %v387 = vrot.slane %v263, 1
      %v388 = vrot.slane %v234, 1
      %v389 = vrot.slane %v236, 1
      %v390 = vrot.slane %v238, 1
      %v391 = vrot.slane %v240, 1
      %v392 = vrot.slane %v242, 1
      %v393 = vrot.slane %v244, 1
      %v394 = vrot.slane %v246, 1
      %v395 = vrot.slane %v248, 1
      %v396 = vrot.slane %v250, 1
      %v397 = vrot.slane %v252, 1
      %v398 = vrot.slane %v254, 1
      %v399 = vrot.slane %v256, 1
      %v400 = vrot.slane %v258, 1
      %v401 = vrot.slane %v260, 1
      %v402 = vrot.slane %v262, 1
      %v403 = vrot.slane %v264, 1
      %vm404 = vcmp.lt.s32.totalorder %v269, 7
      %v405 = vsel %vm404, %v372, %v388
      %v406 = vsel %vm404, %v373, %v389
      %v407 = vsel %vm404, %v374, %v390
      %v408 = vsel %vm404, %v375, %v391
      %v409 = vsel %vm404, %v376, %v392
      %v410 = vsel %vm404, %v377, %v393
      %v411 = vsel %vm404, %v378, %v394
      %v412 = vsel %vm404, %v379, %v395
      %v413 = vsel %vm404, %v380, %v396
      %v414 = vsel %vm404, %v381, %v397
      %v415 = vsel %vm404, %v382, %v398
      %v416 = vsel %vm404, %v383, %v399
      %v417 = vsel %vm404, %v384, %v400
      %v418 = vsel %vm404, %v385, %v401
      %v419 = vsel %vm404, %v386, %v402
      %v420 = vsel %vm404, %v387, %v403
      %v421 = vsel %vm404, %v388, %v372
      %v422 = vsel %vm404, %v389, %v373
      %v423 = vsel %vm404, %v390, %v374
      %v424 = vsel %vm404, %v391, %v375
      %v425 = vsel %vm404, %v392, %v376
      %v426 = vsel %vm404, %v393, %v377
      %v427 = vsel %vm404, %v394, %v378
      %v428 = vsel %vm404, %v395, %v379
      %v429 = vsel %vm404, %v396, %v380
      %v430 = vsel %vm404, %v397, %v381
      %v431 = vsel %vm404, %v398, %v382
      %v432 = vsel %vm404, %v399, %v383
      %v433 = vsel %vm404, %v400, %v384
      %v434 = vsel %vm404, %v401, %v385
      %v435 = vsel %vm404, %v402, %v386
      %v436 = vsel %vm404, %v403, %v387
      %v437 = vsel %vm273, %v405, 0.0
      %v438 = vsel %vm274, %v421, 0.0
      %v439 = vsel %vm273, %v406, 0.0
      %v440 = vsel %vm274, %v422, 0.0
      %v441 = vsel %vm273, %v407, 0.0
      %v442 = vsel %vm274, %v423, 0.0
      %v443 = vsel %vm273, %v408, 0.0
      %v444 = vsel %vm274, %v424, 0.0
      %v445 = vsel %vm273, %v409, 0.0
      %v446 = vsel %vm274, %v425, 0.0
      %v447 = vsel %vm273, %v410, 0.0
      %v448 = vsel %vm274, %v426, 0.0
      %v449 = vsel %vm273, %v411, 0.0
      %v450 = vsel %vm274, %v427, 0.0
      %v451 = vsel %vm273, %v412, 0.0
      %v452 = vsel %vm274, %v428, 0.0
      %v453 = vsel %vm273, %v413, 0.0
      %v454 = vsel %vm274, %v429, 0.0
      %v455 = vsel %vm273, %v414, 0.0
      %v456 = vsel %vm274, %v430, 0.0
      %v457 = vsel %vm273, %v415, 0.0
      %v458 = vsel %vm274, %v431, 0.0
      %v459 = vsel %vm273, %v416, 0.0
      %v460 = vsel %vm274, %v432, 0.0
      %v461 = vsel %vm273, %v417, 0.0
      %v462 = vsel %vm274, %v433, 0.0
      %v463 = vsel %vm273, %v418, 0.0
      %v464 = vsel %vm274, %v434, 0.0
      %v465 = vsel %vm273, %v419, 0.0
      %v466 = vsel %vm274, %v435, 0.0
      %v467 = vsel %vm273, %v420, 0.0
      %v468 = vsel %vm274, %v436, 0.0
      %v469 = vperm.slane %v265, 0
      %v470 = vmul.f32 %v340, %v469
      %v471 = vmul.f32 %v341, %v469
      %v472 = vmul.f32 %v342, %v469
      %v473 = vmul.f32 %v343, %v469
      %v474 = vmul.f32 %v344, %v469
      %v475 = vmul.f32 %v345, %v469
      %v476 = vmul.f32 %v346, %v469
      %v477 = vmul.f32 %v347, %v469
      %v478 = vmul.f32 %v348, %v469
      %v479 = vmul.f32 %v349, %v469
      %v480 = vmul.f32 %v350, %v469
      %v481 = vmul.f32 %v351, %v469
      %v482 = vmul.f32 %v352, %v469
      %v483 = vmul.f32 %v353, %v469
      %v484 = vmul.f32 %v354, %v469
      %v485 = vmul.f32 %v355, %v469
      %v486 = vmul.f32 %v356, %v469
      %v487 = vmul.f32 %v357, %v469
      %v488 = vmul.f32 %v358, %v469
      %v489 = vmul.f32 %v359, %v469
      %v490 = vmul.f32 %v360, %v469
      %v491 = vmul.f32 %v361, %v469
      %v492 = vmul.f32 %v362, %v469
      %v493 = vmul.f32 %v363, %v469
      %v494 = vmul.f32 %v364, %v469
      %v495 = vmul.f32 %v365, %v469
      %v496 = vmul.f32 %v366, %v469
      %v497 = vmul.f32 %v367, %v469
      %v498 = vmul.f32 %v368, %v469
      %v499 = vmul.f32 %v369, %v469
      %v500 = vperm.slane %v265, 1
      %v501 = vmul.f32 %v233, %v500
      %v502 = vmul.f32 %v234, %v500
      %v503 = vmul.f32 %v235, %v500
      %v504 = vmul.f32 %v236, %v500
      %v505 = vmul.f32 %v237, %v500
      %v506 = vmul.f32 %v238, %v500
      %v507 = vmul.f32 %v239, %v500
      %v508 = vmul.f32 %v240, %v500
      %v509 = vmul.f32 %v241, %v500
      %v510 = vmul.f32 %v242, %v500
      %v511 = vmul.f32 %v243, %v500
      %v512 = vmul.f32 %v244, %v500
      %v513 = vmul.f32 %v245, %v500
      %v514 = vmul.f32 %v246, %v500
      %v515 = vmul.f32 %v247, %v500
      %v516 = vmul.f32 %v248, %v500
      %v517 = vmul.f32 %v249, %v500
      %v518 = vmul.f32 %v250, %v500
      %v519 = vmul.f32 %v251, %v500
      %v520 = vmul.f32 %v252, %v500
      %v521 = vmul.f32 %v253, %v500
      %v522 = vmul.f32 %v254, %v500
      %v523 = vmul.f32 %v255, %v500
      %v524 = vmul.f32 %v256, %v500
      %v525 = vmul.f32 %v257, %v500
      %v526 = vmul.f32 %v258, %v500
      %v527 = vmul.f32 %v259, %v500
      %v528 = vmul.f32 %v260, %v500
      %v529 = vmul.f32 %v261, %v500
      %v530 = vmul.f32 %v262, %v500
      %v531 = vadd.f32 %v470, %v501
      %v532 = vadd.f32 %v471, %v502
      %v533 = vadd.f32 %v472, %v503
      %v534 = vadd.f32 %v473, %v504
      %v535 = vadd.f32 %v474, %v505
      %v536 = vadd.f32 %v475, %v506
      %v537 = vadd.f32 %v476, %v507
      %v538 = vadd.f32 %v477, %v508
      %v539 = vadd.f32 %v478, %v509
      %v540 = vadd.f32 %v479, %v510
      %v541 = vadd.f32 %v480, %v511
      %v542 = vadd.f32 %v481, %v512
      %v543 = vadd.f32 %v482, %v513
      %v544 = vadd.f32 %v483, %v514
      %v545 = vadd.f32 %v484, %v515
      %v546 = vadd.f32 %v485, %v516
      %v547 = vadd.f32 %v486, %v517
      %v548 = vadd.f32 %v487, %v518
      %v549 = vadd.f32 %v488, %v519
      %v550 = vadd.f32 %v489, %v520
      %v551 = vadd.f32 %v490, %v521
      %v552 = vadd.f32 %v491, %v522
      %v553 = vadd.f32 %v492, %v523
      %v554 = vadd.f32 %v493, %v524
      %v555 = vadd.f32 %v494, %v525
      %v556 = vadd.f32 %v495, %v526
      %v557 = vadd.f32 %v496, %v527
      %v558 = vadd.f32 %v497, %v528
      %v559 = vadd.f32 %v498, %v529
      %v560 = vadd.f32 %v499, %v530
      %v561 = vperm.slane %v265, 2
      %v562 = vmul.f32 %v437, %v561
      %v563 = vmul.f32 %v438, %v561
      %v564 = vmul.f32 %v439, %v561
      %v565 = vmul.f32 %v440, %v561
      %v566 = vmul.f32 %v441, %v561
      %v567 = vmul.f32 %v442, %v561
      %v568 = vmul.f32 %v443, %v561
      %v569 = vmul.f32 %v444, %v561
      %v570 = vmul.f32 %v445, %v561
      %v571 = vmul.f32 %v446, %v561
      %v572 = vmul.f32 %v447, %v561
      %v573 = vmul.f32 %v448, %v561
      %v574 = vmul.f32 %v449, %v561
      %v575 = vmul.f32 %v450, %v561
      %v576 = vmul.f32 %v451, %v561
      %v577 = vmul.f32 %v452, %v561
      %v578 = vmul.f32 %v453, %v561
      %v579 = vmul.f32 %v454, %v561
      %v580 = vmul.f32 %v455, %v561
      %v581 = vmul.f32 %v456, %v561
      %v582 = vmul.f32 %v457, %v561
      %v583 = vmul.f32 %v458, %v561
      %v584 = vmul.f32 %v459, %v561
      %v585 = vmul.f32 %v460, %v561
      %v586 = vmul.f32 %v461, %v561
      %v587 = vmul.f32 %v462, %v561
      %v588 = vmul.f32 %v463, %v561
      %v589 = vmul.f32 %v464, %v561
      %v590 = vmul.f32 %v465, %v561
      %v591 = vmul.f32 %v466, %v561
      %v592 = vadd.f32 %v531, %v562
      %v593 = vadd.f32 %v532, %v563
      %v594 = vadd.f32 %v533, %v564
      %v595 = vadd.f32 %v534, %v565
      %v596 = vadd.f32 %v535, %v566
      %v597 = vadd.f32 %v536, %v567
      %v598 = vadd.f32 %v537, %v568
      %v599 = vadd.f32 %v538, %v569
      %v600 = vadd.f32 %v539, %v570
      %v601 = vadd.f32 %v540, %v571
      %v602 = vadd.f32 %v541, %v572
      %v603 = vadd.f32 %v542, %v573
      %v604 = vadd.f32 %v543, %v574
      %v605 = vadd.f32 %v544, %v575
      %v606 = vadd.f32 %v545, %v576
      %v607 = vadd.f32 %v546, %v577
      %v608 = vadd.f32 %v547, %v578
      %v609 = vadd.f32 %v548, %v579
      %v610 = vadd.f32 %v549, %v580
      %v611 = vadd.f32 %v550, %v581
      %v612 = vadd.f32 %v551, %v582
      %v613 = vadd.f32 %v552, %v583
      %v614 = vadd.f32 %v553, %v584
      %v615 = vadd.f32 %v554, %v585
      %v616 = vadd.f32 %v555, %v586
      %v617 = vadd.f32 %v556, %v587
      %v618 = vadd.f32 %v557, %v588
      %v619 = vadd.f32 %v558, %v589
      %v620 = vadd.f32 %v559, %v590
      %v621 = vadd.f32 %v560, %v591
      %v622 = vadd.f32 %v592, 0.0
      %v623 = vadd.f32 %v593, 0.0
      %v624 = vadd.f32 %v594, 0.0
      %v625 = vadd.f32 %v595, 0.0
      %v626 = vadd.f32 %v596, 0.0
      %v627 = vadd.f32 %v597, 0.0
      %v628 = vadd.f32 %v598, 0.0
      %v629 = vadd.f32 %v599, 0.0
      %v630 = vadd.f32 %v600, 0.0
      %v631 = vadd.f32 %v601, 0.0
      %v632 = vadd.f32 %v602, 0.0
      %v633 = vadd.f32 %v603, 0.0
      %v634 = vadd.f32 %v604, 0.0
      %v635 = vadd.f32 %v605, 0.0
      %v636 = vadd.f32 %v606, 0.0
      %v637 = vadd.f32 %v607, 0.0
      %v638 = vadd.f32 %v608, 0.0
      %v639 = vadd.f32 %v609, 0.0
      %v640 = vadd.f32 %v610, 0.0
      %v641 = vadd.f32 %v611, 0.0
      %v642 = vadd.f32 %v612, 0.0
      %v643 = vadd.f32 %v613, 0.0
      %v644 = vadd.f32 %v614, 0.0
      %v645 = vadd.f32 %v615, 0.0
      %v646 = vadd.f32 %v616, 0.0
      %v647 = vadd.f32 %v617, 0.0
      %v648 = vadd.f32 %v618, 0.0
      %v649 = vadd.f32 %v619, 0.0
      %v650 = vadd.f32 %v620, 0.0
      %v651 = vadd.f32 %v621, 0.0
      %v652 = vperm.slane %v266, 0
      %v653 = vmul.f32 %v340, %v652
      %v654 = vmul.f32 %v341, %v652
      %v655 = vmul.f32 %v342, %v652
      %v656 = vmul.f32 %v343, %v652
      %v657 = vmul.f32 %v344, %v652
      %v658 = vmul.f32 %v345, %v652
      %v659 = vmul.f32 %v346, %v652
      %v660 = vmul.f32 %v347, %v652
      %v661 = vmul.f32 %v348, %v652
      %v662 = vmul.f32 %v349, %v652
      %v663 = vmul.f32 %v350, %v652
      %v664 = vmul.f32 %v351, %v652
      %v665 = vmul.f32 %v352, %v652
      %v666 = vmul.f32 %v353, %v652
      %v667 = vmul.f32 %v354, %v652
      %v668 = vmul.f32 %v355, %v652
      %v669 = vmul.f32 %v356, %v652
      %v670 = vmul.f32 %v357, %v652
      %v671 = vmul.f32 %v358, %v652
      %v672 = vmul.f32 %v359, %v652
      %v673 = vmul.f32 %v360, %v652
      %v674 = vmul.f32 %v361, %v652
      %v675 = vmul.f32 %v362, %v652
      %v676 = vmul.f32 %v363, %v652
      %v677 = vmul.f32 %v364, %v652
      %v678 = vmul.f32 %v365, %v652
      %v679 = vmul.f32 %v366, %v652
      %v680 = vmul.f32 %v367, %v652
      %v681 = vmul.f32 %v368, %v652
      %v682 = vmul.f32 %v369, %v652
      %v683 = vmul.f32 %v370, %v652
      %v684 = vmul.f32 %v371, %v652
      %v685 = vperm.slane %v266, 1
      %v686 = vmul.f32 %v233, %v685
      %v687 = vmul.f32 %v234, %v685
      %v688 = vmul.f32 %v235, %v685
      %v689 = vmul.f32 %v236, %v685
      %v690 = vmul.f32 %v237, %v685
      %v691 = vmul.f32 %v238, %v685
      %v692 = vmul.f32 %v239, %v685
      %v693 = vmul.f32 %v240, %v685
      %v694 = vmul.f32 %v241, %v685
      %v695 = vmul.f32 %v242, %v685
      %v696 = vmul.f32 %v243, %v685
      %v697 = vmul.f32 %v244, %v685
      %v698 = vmul.f32 %v245, %v685
      %v699 = vmul.f32 %v246, %v685
      %v700 = vmul.f32 %v247, %v685
      %v701 = vmul.f32 %v248, %v685
      %v702 = vmul.f32 %v249, %v685
      %v703 = vmul.f32 %v250, %v685
      %v704 = vmul.f32 %v251, %v685
      %v705 = vmul.f32 %v252, %v685
      %v706 = vmul.f32 %v253, %v685
      %v707 = vmul.f32 %v254, %v685
      %v708 = vmul.f32 %v255, %v685
      %v709 = vmul.f32 %v256, %v685
      %v710 = vmul.f32 %v257, %v685
      %v711 = vmul.f32 %v258, %v685
      %v712 = vmul.f32 %v259, %v685
      %v713 = vmul.f32 %v260, %v685
      %v714 = vmul.f32 %v261, %v685
      %v715 = vmul.f32 %v262, %v685
      %v716 = vmul.f32 %v263, %v685
      %v717 = vmul.f32 %v264, %v685
      %v718 = vadd.f32 %v653, %v686
      %v719 = vadd.f32 %v654, %v687
      %v720 = vadd.f32 %v655, %v688
      %v721 = vadd.f32 %v656, %v689
      %v722 = vadd.f32 %v657, %v690
      %v723 = vadd.f32 %v658, %v691
      %v724 = vadd.f32 %v659, %v692
      %v725 = vadd.f32 %v660, %v693
      %v726 = vadd.f32 %v661, %v694
      %v727 = vadd.f32 %v662, %v695
      %v728 = vadd.f32 %v663, %v696
      %v729 = vadd.f32 %v664, %v697
      %v730 = vadd.f32 %v665, %v698
      %v731 = vadd.f32 %v666, %v699
      %v732 = vadd.f32 %v667, %v700
      %v733 = vadd.f32 %v668, %v701
      %v734 = vadd.f32 %v669, %v702
      %v735 = vadd.f32 %v670, %v703
      %v736 = vadd.f32 %v671, %v704
      %v737 = vadd.f32 %v672, %v705
      %v738 = vadd.f32 %v673, %v706
      %v739 = vadd.f32 %v674, %v707
      %v740 = vadd.f32 %v675, %v708
      %v741 = vadd.f32 %v676, %v709
      %v742 = vadd.f32 %v677, %v710
      %v743 = vadd.f32 %v678, %v711
      %v744 = vadd.f32 %v679, %v712
      %v745 = vadd.f32 %v680, %v713
      %v746 = vadd.f32 %v681, %v714
      %v747 = vadd.f32 %v682, %v715
      %v748 = vadd.f32 %v683, %v716
      %v749 = vadd.f32 %v684, %v717
      %v750 = vperm.slane %v266, 2
      %v751 = vmul.f32 %v437, %v750
      %v752 = vmul.f32 %v438, %v750
      %v753 = vmul.f32 %v439, %v750
      %v754 = vmul.f32 %v440, %v750
      %v755 = vmul.f32 %v441, %v750
      %v756 = vmul.f32 %v442, %v750
      %v757 = vmul.f32 %v443, %v750
      %v758 = vmul.f32 %v444, %v750
      %v759 = vmul.f32 %v445, %v750
      %v760 = vmul.f32 %v446, %v750
      %v761 = vmul.f32 %v447, %v750
      %v762 = vmul.f32 %v448, %v750
      %v763 = vmul.f32 %v449, %v750
      %v764 = vmul.f32 %v450, %v750
      %v765 = vmul.f32 %v451, %v750
      %v766 = vmul.f32 %v452, %v750
      %v767 = vmul.f32 %v453, %v750
      %v768 = vmul.f32 %v454, %v750
      %v769 = vmul.f32 %v455, %v750
      %v770 = vmul.f32 %v456, %v750
      %v771 = vmul.f32 %v457, %v750
      %v772 = vmul.f32 %v458, %v750
      %v773 = vmul.f32 %v459, %v750
      %v774 = vmul.f32 %v460, %v750
      %v775 = vmul.f32 %v461, %v750
      %v776 = vmul.f32 %v462, %v750
      %v777 = vmul.f32 %v463, %v750
      %v778 = vmul.f32 %v464, %v750
      %v779 = vmul.f32 %v465, %v750
      %v780 = vmul.f32 %v466, %v750
      %v781 = vmul.f32 %v467, %v750
      %v782 = vmul.f32 %v468, %v750
      %v783 = vadd.f32 %v718, %v751
      %v784 = vadd.f32 %v719, %v752
      %v785 = vadd.f32 %v720, %v753
      %v786 = vadd.f32 %v721, %v754
      %v787 = vadd.f32 %v722, %v755
      %v788 = vadd.f32 %v723, %v756
      %v789 = vadd.f32 %v724, %v757
      %v790 = vadd.f32 %v725, %v758
      %v791 = vadd.f32 %v726, %v759
      %v792 = vadd.f32 %v727, %v760
      %v793 = vadd.f32 %v728, %v761
      %v794 = vadd.f32 %v729, %v762
      %v795 = vadd.f32 %v730, %v763
      %v796 = vadd.f32 %v731, %v764
      %v797 = vadd.f32 %v732, %v765
      %v798 = vadd.f32 %v733, %v766
      %v799 = vadd.f32 %v734, %v767
      %v800 = vadd.f32 %v735, %v768
      %v801 = vadd.f32 %v736, %v769
      %v802 = vadd.f32 %v737, %v770
      %v803 = vadd.f32 %v738, %v771
      %v804 = vadd.f32 %v739, %v772
      %v805 = vadd.f32 %v740, %v773
      %v806 = vadd.f32 %v741, %v774
      %v807 = vadd.f32 %v742, %v775
      %v808 = vadd.f32 %v743, %v776
      %v809 = vadd.f32 %v744, %v777
      %v810 = vadd.f32 %v745, %v778
      %v811 = vadd.f32 %v746, %v779
      %v812 = vadd.f32 %v747, %v780
      %v813 = vadd.f32 %v748, %v781
      %v814 = vadd.f32 %v749, %v782
      %v815 = vadd.f32 %v783, 0.0
      %v816 = vadd.f32 %v784, 0.0
      %v817 = vadd.f32 %v622, %v785
      %v818 = vadd.f32 %v623, %v786
      %v819 = vadd.f32 %v624, %v787
      %v820 = vadd.f32 %v625, %v788
      %v821 = vadd.f32 %v626, %v789
      %v822 = vadd.f32 %v627, %v790
      %v823 = vadd.f32 %v628, %v791
      %v824 = vadd.f32 %v629, %v792
      %v825 = vadd.f32 %v630, %v793
      %v826 = vadd.f32 %v631, %v794
      %v827 = vadd.f32 %v632, %v795
      %v828 = vadd.f32 %v633, %v796
      %v829 = vadd.f32 %v634, %v797
      %v830 = vadd.f32 %v635, %v798
      %v831 = vadd.f32 %v636, %v799
      %v832 = vadd.f32 %v637, %v800
      %v833 = vadd.f32 %v638, %v801
      %v834 = vadd.f32 %v639, %v802
      %v835 = vadd.f32 %v640, %v803
      %v836 = vadd.f32 %v641, %v804
      %v837 = vadd.f32 %v642, %v805
      %v838 = vadd.f32 %v643, %v806
      %v839 = vadd.f32 %v644, %v807
      %v840 = vadd.f32 %v645, %v808
      %v841 = vadd.f32 %v646, %v809
      %v842 = vadd.f32 %v647, %v810
      %v843 = vadd.f32 %v648, %v811
      %v844 = vadd.f32 %v649, %v812
      %v845 = vadd.f32 %v650, %v813
      %v846 = vadd.f32 %v651, %v814
      %v847 = vperm.slane %v267, 0
      %v848 = vmul.f32 %v342, %v847
      %v849 = vmul.f32 %v343, %v847
      %v850 = vmul.f32 %v344, %v847
      %v851 = vmul.f32 %v345, %v847
      %v852 = vmul.f32 %v346, %v847
      %v853 = vmul.f32 %v347, %v847
      %v854 = vmul.f32 %v348, %v847
      %v855 = vmul.f32 %v349, %v847
      %v856 = vmul.f32 %v350, %v847
      %v857 = vmul.f32 %v351, %v847
      %v858 = vmul.f32 %v352, %v847
      %v859 = vmul.f32 %v353, %v847
      %v860 = vmul.f32 %v354, %v847
      %v861 = vmul.f32 %v355, %v847
      %v862 = vmul.f32 %v356, %v847
      %v863 = vmul.f32 %v357, %v847
      %v864 = vmul.f32 %v358, %v847
      %v865 = vmul.f32 %v359, %v847
      %v866 = vmul.f32 %v360, %v847
      %v867 = vmul.f32 %v361, %v847
      %v868 = vmul.f32 %v362, %v847
      %v869 = vmul.f32 %v363, %v847
      %v870 = vmul.f32 %v364, %v847
      %v871 = vmul.f32 %v365, %v847
      %v872 = vmul.f32 %v366, %v847
      %v873 = vmul.f32 %v367, %v847
      %v874 = vmul.f32 %v368, %v847
      %v875 = vmul.f32 %v369, %v847
      %v876 = vmul.f32 %v370, %v847
      %v877 = vmul.f32 %v371, %v847
      %v878 = vperm.slane %v267, 1
      %v879 = vmul.f32 %v235, %v878
      %v880 = vmul.f32 %v236, %v878
      %v881 = vmul.f32 %v237, %v878
      %v882 = vmul.f32 %v238, %v878
      %v883 = vmul.f32 %v239, %v878
      %v884 = vmul.f32 %v240, %v878
      %v885 = vmul.f32 %v241, %v878
      %v886 = vmul.f32 %v242, %v878
      %v887 = vmul.f32 %v243, %v878
      %v888 = vmul.f32 %v244, %v878
      %v889 = vmul.f32 %v245, %v878
      %v890 = vmul.f32 %v246, %v878
      %v891 = vmul.f32 %v247, %v878
      %v892 = vmul.f32 %v248, %v878
      %v893 = vmul.f32 %v249, %v878
      %v894 = vmul.f32 %v250, %v878
      %v895 = vmul.f32 %v251, %v878
      %v896 = vmul.f32 %v252, %v878
      %v897 = vmul.f32 %v253, %v878
      %v898 = vmul.f32 %v254, %v878
      %v899 = vmul.f32 %v255, %v878
      %v900 = vmul.f32 %v256, %v878
      %v901 = vmul.f32 %v257, %v878
      %v902 = vmul.f32 %v258, %v878
      %v903 = vmul.f32 %v259, %v878
      %v904 = vmul.f32 %v260, %v878
      %v905 = vmul.f32 %v261, %v878
      %v906 = vmul.f32 %v262, %v878
      %v907 = vmul.f32 %v263, %v878
      %v908 = vmul.f32 %v264, %v878
      %v909 = vadd.f32 %v848, %v879
      %v910 = vadd.f32 %v849, %v880
      %v911 = vadd.f32 %v850, %v881
      %v912 = vadd.f32 %v851, %v882
      %v913 = vadd.f32 %v852, %v883
      %v914 = vadd.f32 %v853, %v884
      %v915 = vadd.f32 %v854, %v885
      %v916 = vadd.f32 %v855, %v886
      %v917 = vadd.f32 %v856, %v887
      %v918 = vadd.f32 %v857, %v888
      %v919 = vadd.f32 %v858, %v889
      %v920 = vadd.f32 %v859, %v890
      %v921 = vadd.f32 %v860, %v891
      %v922 = vadd.f32 %v861, %v892
      %v923 = vadd.f32 %v862, %v893
      %v924 = vadd.f32 %v863, %v894
      %v925 = vadd.f32 %v864, %v895
      %v926 = vadd.f32 %v865, %v896
      %v927 = vadd.f32 %v866, %v897
      %v928 = vadd.f32 %v867, %v898
      %v929 = vadd.f32 %v868, %v899
      %v930 = vadd.f32 %v869, %v900
      %v931 = vadd.f32 %v870, %v901
      %v932 = vadd.f32 %v871, %v902
      %v933 = vadd.f32 %v872, %v903
      %v934 = vadd.f32 %v873, %v904
      %v935 = vadd.f32 %v874, %v905
      %v936 = vadd.f32 %v875, %v906
      %v937 = vadd.f32 %v876, %v907
      %v938 = vadd.f32 %v877, %v908
      %v939 = vperm.slane %v267, 2
      %v940 = vmul.f32 %v439, %v939
      %v941 = vmul.f32 %v440, %v939
      %v942 = vmul.f32 %v441, %v939
      %v943 = vmul.f32 %v442, %v939
      %v944 = vmul.f32 %v443, %v939
      %v945 = vmul.f32 %v444, %v939
      %v946 = vmul.f32 %v445, %v939
      %v947 = vmul.f32 %v446, %v939
      %v948 = vmul.f32 %v447, %v939
      %v949 = vmul.f32 %v448, %v939
      %v950 = vmul.f32 %v449, %v939
      %v951 = vmul.f32 %v450, %v939
      %v952 = vmul.f32 %v451, %v939
      %v953 = vmul.f32 %v452, %v939
      %v954 = vmul.f32 %v453, %v939
      %v955 = vmul.f32 %v454, %v939
      %v956 = vmul.f32 %v455, %v939
      %v957 = vmul.f32 %v456, %v939
      %v958 = vmul.f32 %v457, %v939
      %v959 = vmul.f32 %v458, %v939
      %v960 = vmul.f32 %v459, %v939
      %v961 = vmul.f32 %v460, %v939
      %v962 = vmul.f32 %v461, %v939
      %v963 = vmul.f32 %v462, %v939
      %v964 = vmul.f32 %v463, %v939
      %v965 = vmul.f32 %v464, %v939
      %v966 = vmul.f32 %v465, %v939
      %v967 = vmul.f32 %v466, %v939
      %v968 = vmul.f32 %v467, %v939
      %v969 = vmul.f32 %v468, %v939
      %v970 = vadd.f32 %v909, %v940
      %v971 = vadd.f32 %v910, %v941
      %v972 = vadd.f32 %v911, %v942
      %v973 = vadd.f32 %v912, %v943
      %v974 = vadd.f32 %v913, %v944
      %v975 = vadd.f32 %v914, %v945
      %v976 = vadd.f32 %v915, %v946
      %v977 = vadd.f32 %v916, %v947
      %v978 = vadd.f32 %v917, %v948
      %v979 = vadd.f32 %v918, %v949
      %v980 = vadd.f32 %v919, %v950
      %v981 = vadd.f32 %v920, %v951
      %v982 = vadd.f32 %v921, %v952
      %v983 = vadd.f32 %v922, %v953
      %v984 = vadd.f32 %v923, %v954
      %v985 = vadd.f32 %v924, %v955
      %v986 = vadd.f32 %v925, %v956
      %v987 = vadd.f32 %v926, %v957
      %v988 = vadd.f32 %v927, %v958
      %v989 = vadd.f32 %v928, %v959
      %v990 = vadd.f32 %v929, %v960
      %v991 = vadd.f32 %v930, %v961
      %v992 = vadd.f32 %v931, %v962
      %v993 = vadd.f32 %v932, %v963
      %v994 = vadd.f32 %v933, %v964
      %v995 = vadd.f32 %v934, %v965
      %v996 = vadd.f32 %v935, %v966
      %v997 = vadd.f32 %v936, %v967
      %v998 = vadd.f32 %v937, %v968
      %v999 = vadd.f32 %v938, %v969
      %v1000 = vadd.f32 %v815, %v970
      %v1001 = vadd.f32 %v816, %v971
      %v1002 = vadd.f32 %v817, %v972
      %v1003 = vadd.f32 %v818, %v973
      %v1004 = vadd.f32 %v819, %v974
      %v1005 = vadd.f32 %v820, %v975
      %v1006 = vadd.f32 %v821, %v976
      %v1007 = vadd.f32 %v822, %v977
      %v1008 = vadd.f32 %v823, %v978
      %v1009 = vadd.f32 %v824, %v979
      %v1010 = vadd.f32 %v825, %v980
      %v1011 = vadd.f32 %v826, %v981
      %v1012 = vadd.f32 %v827, %v982
      %v1013 = vadd.f32 %v828, %v983
      %v1014 = vadd.f32 %v829, %v984
      %v1015 = vadd.f32 %v830, %v985
      %v1016 = vadd.f32 %v831, %v986
      %v1017 = vadd.f32 %v832, %v987
      %v1018 = vadd.f32 %v833, %v988
      %v1019 = vadd.f32 %v834, %v989
      %v1020 = vadd.f32 %v835, %v990
      %v1021 = vadd.f32 %v836, %v991
      %v1022 = vadd.f32 %v837, %v992
      %v1023 = vadd.f32 %v838, %v993
      %v1024 = vadd.f32 %v839, %v994
      %v1025 = vadd.f32 %v840, %v995
      %v1026 = vadd.f32 %v841, %v996
      %v1027 = vadd.f32 %v842, %v997
      %v1028 = vadd.f32 %v843, %v998
      %v1029 = vadd.f32 %v844, %v999
      %v1030 = vadd.f32 %v845, 0.0
      %v1031 = vadd.f32 %v846, 0.0
      %v1032 = vld [vmem:[%s224] sm:$0x1]
      %v1034 = vperm.slane %v1032, 0
      %v1036 = vadd.f32 %v1000, %v1034
      %v1037 = vadd.f32 %v1001, %v1034
      %v1038 = vadd.f32 %v1002, %v1034
      %v1039 = vadd.f32 %v1003, %v1034
      %v1040 = vadd.f32 %v1004, %v1034
      %v1041 = vadd.f32 %v1005, %v1034
      %v1042 = vadd.f32 %v1006, %v1034
      %v1043 = vadd.f32 %v1007, %v1034
      %v1044 = vadd.f32 %v1008, %v1034
      %v1045 = vadd.f32 %v1009, %v1034
      %v1046 = vadd.f32 %v1010, %v1034
      %v1047 = vadd.f32 %v1011, %v1034
      %v1048 = vadd.f32 %v1012, %v1034
      %v1049 = vadd.f32 %v1013, %v1034
      %v1050 = vadd.f32 %v1014, %v1034
      %v1051 = vadd.f32 %v1015, %v1034
      %v1052 = vadd.f32 %v1016, %v1034
      %v1053 = vadd.f32 %v1017, %v1034
      %v1054 = vadd.f32 %v1018, %v1034
      %v1055 = vadd.f32 %v1019, %v1034
      %v1056 = vadd.f32 %v1020, %v1034
      %v1057 = vadd.f32 %v1021, %v1034
      %v1058 = vadd.f32 %v1022, %v1034
      %v1059 = vadd.f32 %v1023, %v1034
      %v1060 = vadd.f32 %v1024, %v1034
      %v1061 = vadd.f32 %v1025, %v1034
      %v1062 = vadd.f32 %v1026, %v1034
      %v1063 = vadd.f32 %v1027, %v1034
      %v1064 = vadd.f32 %v1028, %v1034
      %v1065 = vadd.f32 %v1029, %v1034
      %v1066 = vadd.f32 %v1030, %v1034
      %v1067 = vadd.f32 %v1031, %v1034
      %v1068 = vmax.f32 %v1036, 0.0
      %v1069 = vmax.f32 %v1037, 0.0
      %v1070 = vmax.f32 %v1038, 0.0
      %v1071 = vmax.f32 %v1039, 0.0
      %v1072 = vmax.f32 %v1040, 0.0
      %v1073 = vmax.f32 %v1041, 0.0
      %v1074 = vmax.f32 %v1042, 0.0
      %v1075 = vmax.f32 %v1043, 0.0
      %v1076 = vmax.f32 %v1044, 0.0
      %v1077 = vmax.f32 %v1045, 0.0
      %v1078 = vmax.f32 %v1046, 0.0
      %v1079 = vmax.f32 %v1047, 0.0
      %v1080 = vmax.f32 %v1048, 0.0
      %v1081 = vmax.f32 %v1049, 0.0
      %v1082 = vmax.f32 %v1050, 0.0
      %v1083 = vmax.f32 %v1051, 0.0
      %v1084 = vmax.f32 %v1052, 0.0
      %v1085 = vmax.f32 %v1053, 0.0
      %v1086 = vmax.f32 %v1054, 0.0
      %v1087 = vmax.f32 %v1055, 0.0
      %v1088 = vmax.f32 %v1056, 0.0
      %v1089 = vmax.f32 %v1057, 0.0
      %v1090 = vmax.f32 %v1058, 0.0
      %v1091 = vmax.f32 %v1059, 0.0
      %v1092 = vmax.f32 %v1060, 0.0
      %v1093 = vmax.f32 %v1061, 0.0
      %v1094 = vmax.f32 %v1062, 0.0
      %v1095 = vmax.f32 %v1063, 0.0
      %v1096 = vmax.f32 %v1064, 0.0
      %v1097 = vmax.f32 %v1065, 0.0
      %v1098 = vmax.f32 %v1066, 0.0
      %v1099 = vmax.f32 %v1067, 0.0
      %v1100 = vmin.f32 %v1068, 6.0
      %v1101 = vmin.f32 %v1069, 6.0
      %v1102 = vmin.f32 %v1070, 6.0
      %v1103 = vmin.f32 %v1071, 6.0
      %v1104 = vmin.f32 %v1072, 6.0
      %v1105 = vmin.f32 %v1073, 6.0
      %v1106 = vmin.f32 %v1074, 6.0
      %v1107 = vmin.f32 %v1075, 6.0
      %v1108 = vmin.f32 %v1076, 6.0
      %v1109 = vmin.f32 %v1077, 6.0
      %v1110 = vmin.f32 %v1078, 6.0
      %v1111 = vmin.f32 %v1079, 6.0
      %v1112 = vmin.f32 %v1080, 6.0
      %v1113 = vmin.f32 %v1081, 6.0
      %v1114 = vmin.f32 %v1082, 6.0
      %v1115 = vmin.f32 %v1083, 6.0
      %v1116 = vmin.f32 %v1084, 6.0
      %v1117 = vmin.f32 %v1085, 6.0
      %v1118 = vmin.f32 %v1086, 6.0
      %v1119 = vmin.f32 %v1087, 6.0
      %v1120 = vmin.f32 %v1088, 6.0
      %v1121 = vmin.f32 %v1089, 6.0
      %v1122 = vmin.f32 %v1090, 6.0
      %v1123 = vmin.f32 %v1091, 6.0
      %v1124 = vmin.f32 %v1092, 6.0
      %v1125 = vmin.f32 %v1093, 6.0
      %v1126 = vmin.f32 %v1094, 6.0
      %v1127 = vmin.f32 %v1095, 6.0
      %v1128 = vmin.f32 %v1096, 6.0
      %v1129 = vmin.f32 %v1097, 6.0
      %v1130 = vmin.f32 %v1098, 6.0
      %v1131 = vmin.f32 %v1099, 6.0
      %vm1132 = vcmask 31744
      %1133 = vst.msk [vmem:[%s232] sm:$0xff] %vm1132, %v1100
      %1134 = vst.msk [vmem:[%s232 + $0x8] sm:$0xff] %vm1132, %v1101
      %1135 = vst.msk [vmem:[%s232 + $0x10] sm:$0xff] %vm1132, %v1102
      %1136 = vst.msk [vmem:[%s232 + $0x18] sm:$0xff] %vm1132, %v1103
      %1137 = vst.msk [vmem:[%s232 + $0x20] sm:$0xff] %vm1132, %v1104
      %1138 = vst.msk [vmem:[%s232 + $0x28] sm:$0xff] %vm1132, %v1105
      %1139 = vst.msk [vmem:[%s232 + $0x30] sm:$0xff] %vm1132, %v1106
      %1140 = vst.msk [vmem:[%s232 + $0x38] sm:$0xff] %vm1132, %v1107
      %1141 = vst.msk [vmem:[%s232 + $0x40] sm:$0xff] %vm1132, %v1108
      %1142 = vst.msk [vmem:[%s232 + $0x48] sm:$0xff] %vm1132, %v1109
      %1143 = vst.msk [vmem:[%s232 + $0x50] sm:$0xff] %vm1132, %v1110
      %1144 = vst.msk [vmem:[%s232 + $0x58] sm:$0xff] %vm1132, %v1111
      %1145 = vst.msk [vmem:[%s232 + $0x60] sm:$0xff] %vm1132, %v1112
      %1146 = vst.msk [vmem:[%s232 + $0x68] sm:$0xff] %vm1132, %v1113
      %1147 = vst.msk [vmem:[%s232 + $0x70] sm:$0xff] %vm1132, %v1114
      %1148 = vst.msk [vmem:[%s232 + $0x78] sm:$0xff] %vm1132, %v1115
      %1149 = vst.msk [vmem:[%s232 + $0x80] sm:$0xff] %vm1132, %v1116
      %1150 = vst.msk [vmem:[%s232 + $0x88] sm:$0xff] %vm1132, %v1117
      %1151 = vst.msk [vmem:[%s232 + $0x90] sm:$0xff] %vm1132, %v1118
      %1152 = vst.msk [vmem:[%s232 + $0x98] sm:$0xff] %vm1132, %v1119
      %1153 = vst.msk [vmem:[%s232 + $0xa0] sm:$0xff] %vm1132, %v1120
      %1154 = vst.msk [vmem:[%s232 + $0xa8] sm:$0xff] %vm1132, %v1121
      %1155 = vst.msk [vmem:[%s232 + $0xb0] sm:$0xff] %vm1132, %v1122
      %1156 = vst.msk [vmem:[%s232 + $0xb8] sm:$0xff] %vm1132, %v1123
      %1157 = vst.msk [vmem:[%s232 + $0xc0] sm:$0xff] %vm1132, %v1124
      %1158 = vst.msk [vmem:[%s232 + $0xc8] sm:$0xff] %vm1132, %v1125
      %1159 = vst.msk [vmem:[%s232 + $0xd0] sm:$0xff] %vm1132, %v1126
      %1160 = vst.msk [vmem:[%s232 + $0xd8] sm:$0xff] %vm1132, %v1127
      %1161 = vst.msk [vmem:[%s232 + $0xe0] sm:$0xff] %vm1132, %v1128
      %1162 = vst.msk [vmem:[%s232 + $0xe8] sm:$0xff] %vm1132, %v1129
      %1163 = vst.msk [vmem:[%s232 + $0xf0] sm:$0xff] %vm1132, %v1130
      %1164 = vst.msk [vmem:[%s232 + $0xf8] sm:$0xff] %vm1132, %v1131
      %p1165 = scmp.lt.s32.totalorder %s19, 1
      %s1166 = scalar_select %p1165, %s19, 1
      %p1167 = scmp.lt.s32.totalorder %s18, 0
      %s1168 = scalar_select %p1167, %s18, 0
      %s1169 = smul.addr %s1166, 32
      %s1170 = sadd.s32 %s1168, %s1169
      %s1171 = smul.addr %s1170, 8
      %s1172 = scalar_lea.vmem %s3, %s1171
      // Predicated region
      $region33: #{depthwise_conv_block.3} parent=31 // pred_check
        %p1173 = pneg %p126
      $region34: #{depthwise_conv_block.3} parent=31 // pred_check_branch
        %1175 = sbr.rel (%p1173) target = $region36
      $region35: #{depthwise_conv_block.3} parent=31 // pred_region
        _
      $region36: #{depthwise_conv_block.3} parent=31 // pred_fallthru
        _
    $region32: #{depthwise_conv_block.3} parent=5 // pred_fallthru
      _
    %p1176 = scmp.le.s32.totalorder 2, %s9
    // Predicated region
    $region37: #{depthwise_conv_block.3} parent=5 // pred_check
      %p1177 = pneg %p1176
    $region38: #{depthwise_conv_block.3} parent=5 // pred_check_branch
      %1179 = sbr.rel (%p1177) target = $region40
    $region39: #{depthwise_conv_block.3} parent=5 // pred_region
      %s1180 = ssub.s32 %s9, 2
      // Predicated region
      $region41: #{depthwise_conv_block.3} parent=39 // pred_check
        %p1181 = pneg %p132
      $region42: #{depthwise_conv_block.3} parent=39 // pred_check_branch
        %1183 = sbr.rel (%p1181) target = $region44
      $region43: #{depthwise_conv_block.3} parent=39 // pred_region
        %p1184 = scmp.lt.s32.totalorder %s21, 1
        %s1185 = scalar_select %p1184, %s21, 1
        %p1186 = scmp.lt.s32.totalorder %s20, 0
        %s1187 = scalar_select %p1186, %s20, 0
        %s1188 = smul.addr %s1185, 32
        %s1189 = sadd.s32 %s1187, %s1188
        %s1190 = smul.addr %s1189, 8
        %s1191 = scalar_lea.vmem %s3, %s1190
      $region44: #{depthwise_conv_block.3} parent=39 // pred_fallthru
        _
    $region40: #{depthwise_conv_block.3} parent=5 // pred_fallthru
      _
  $region6: #{depthwise_conv_block.3} parent=0 // loop_footer
    %s13 = sadd.s32 1, %s9
  $region7: #{depthwise_conv_block.3} parent=0 // loop_footer_branch
    %8 = sbr.rel target = $region3
  $region8: #{depthwise_conv_block.3} parent=0 // loop_exit
    _

</llo_original>
